<compile_context>
chip_gen: v5e
topology: v5e:2x2
jax: 0.10.0
libtpu: 0.0.40
codegen_flags: <defaults>
</compile_context>

<pallas_src>
import functools
import math

import jax
import jax.numpy as jnp
from jax import lax
from jax.experimental import pallas as pl
from jax.experimental.pallas import tpu as pltpu


# VMEM budget: ~75% of physical per-core VMEM (≈48 MiB on v7x, 96 MiB on
# v5e/v6e) so double-buffered tiles + resident FFN weights keep headroom.
try:
    _VMEM_CAP = int(pltpu.get_tpu_info().vmem_capacity_bytes)
except Exception:  # fallback if hw query is unavailable
    _VMEM_CAP = 128 * 1024 * 1024
_VMEM_LIMIT = min(96 * 1024 * 1024, (_VMEM_CAP * 3) // 4)


def _cparams(*semantics):
    return pltpu.CompilerParams(dimension_semantics=semantics,
                                vmem_limit_bytes=_VMEM_LIMIT)


def _pick_row_tile(m, cap=512):
    # Big row tiles amortize the ~0.35us/step overhead; a full-extent block for
    # small m avoids any padding / divisibility issue.
    return m if m <= cap else cap


def _layer_norm_f32(y, gamma, beta, eps):
    mean = jnp.mean(y, axis=-1, keepdims=True)
    c = y - mean
    var = jnp.mean(c * c, axis=-1, keepdims=True)
    return c * lax.rsqrt(var + eps) * gamma + beta


# --------------------------------------------------------------------------
# Fused embedding kernel: both Bayesian projections + positional adds.
# --------------------------------------------------------------------------

def _embed_kernel(src_ref, wq_ref, wkv_ref, qpos_ref, kpos_ref, q_ref, kv_ref):
    s = src_ref[0].astype(jnp.bfloat16)                       # (S, F)
    # sqrt(d_model) is folded into wq; embedding biases are pre-added into the
    # positional tables, so each output is one matmul + one add.
    q = jnp.dot(s, wq_ref[...], preferred_element_type=jnp.float32) + qpos_ref[...]
    kv = jnp.dot(s, wkv_ref[...], preferred_element_type=jnp.float32) + kpos_ref[...]
    q_ref[0] = q.astype(q_ref.dtype)
    kv_ref[0] = kv.astype(kv_ref.dtype)


def pallas_embeddings(src, wq, wkv, qpos, kpos):
    b, s_len, f = src.shape
    d = wq.shape[1]
    out_sd = jax.ShapeDtypeStruct((b, s_len, d), jnp.bfloat16)
    return pl.pallas_call(
        _embed_kernel,
        out_shape=(out_sd, out_sd),
        grid=(b,),
        in_specs=[
            pl.BlockSpec((1, s_len, f), lambda i: (i, 0, 0)),
            pl.BlockSpec((f, d), lambda i: (0, 0)),
            pl.BlockSpec((f, d), lambda i: (0, 0)),
            pl.BlockSpec((s_len, d), lambda i: (0, 0)),
            pl.BlockSpec((s_len, d), lambda i: (0, 0)),
        ],
        out_specs=(
            pl.BlockSpec((1, s_len, d), lambda i: (i, 0, 0)),
            pl.BlockSpec((1, s_len, d), lambda i: (i, 0, 0)),
        ),
        compiler_params=_cparams("parallel"),
    )(src, wq, wkv, qpos, kpos)


# --------------------------------------------------------------------------
# Attention block: per (batch, head) grid step computes the head's Q/K/V
# projections, softmax attention and its slice of the output projection,
# accumulating into a VMEM scratch; last head adds bias + residual + LN1.
# q / k / v / ctx never touch HBM.
# --------------------------------------------------------------------------

def _attn_block_kernel(x_ref, kv_ref, wq_ref, bq_ref, wk_ref, bk_ref,
                       wv_ref, bv_ref, wo_ref, bo_ref, g_ref, beta_ref,
                       o_ref, acc_ref, *, eps):
    h = pl.program_id(1)

    @pl.when(h == 0)
    def _():
        acc_ref[...] = jnp.zeros_like(acc_ref)

    x = x_ref[0]                                   # (S, D) bf16, also residual
    kv = kv_ref[0]                                 # (S, D) bf16
    # Per-head projections; the head slice is done by the BlockSpec on the
    # (H, D, dh)-shaped weights, so no sub-lane slicing inside the kernel.
    # 1/sqrt(dh) is folded into wq/bq at init.
    q = (jnp.dot(x, wq_ref[0], preferred_element_type=jnp.float32)
         + bq_ref[0]).astype(jnp.bfloat16)         # (S, dh)
    k = (jnp.dot(kv, wk_ref[0], preferred_element_type=jnp.float32)
         + bk_ref[0]).astype(jnp.bfloat16)
    v = (jnp.dot(kv, wv_ref[0], preferred_element_type=jnp.float32)
         + bv_ref[0]).astype(jnp.bfloat16)

    # scores: contract the last dims directly — no k.T / XLU transpose.
    s = lax.dot_general(q, k, (((1,), (1,)), ((), ())),
                        preferred_element_type=jnp.float32)    # (S, S)
    s = s - jnp.max(s, axis=-1, keepdims=True)
    p = jnp.exp(s)
    inv_l = pl.reciprocal(jnp.sum(p, axis=-1, keepdims=True), approx=True)
    ctx = (jnp.dot(p.astype(jnp.bfloat16), v,
                   preferred_element_type=jnp.float32) * inv_l).astype(jnp.bfloat16)
    # fused output projection: concat_h(ctx_h) @ Wo == sum_h ctx_h @ Wo[h]
    acc_ref[...] += jnp.dot(ctx, wo_ref[0], preferred_element_type=jnp.float32)

    @pl.when(h == pl.num_programs(1) - 1)
    def _():
        y = acc_ref[...] + bo_ref[...] + x.astype(jnp.float32)
        o_ref[0] = _layer_norm_f32(y, g_ref[...], beta_ref[...], eps
                                   ).astype(o_ref.dtype)


def pallas_attention_block(x, kv_emb, p, *, eps):
    b, s_len, d = x.shape
    nh, _, dh = p["wq"].shape
    return pl.pallas_call(
        functools.partial(_attn_block_kernel, eps=eps),
        out_shape=jax.ShapeDtypeStruct((b, s_len, d), jnp.bfloat16),
        grid=(b, nh),
        in_specs=[
            pl.BlockSpec((1, s_len, d), lambda i, j: (i, 0, 0)),   # x (residual)
            pl.BlockSpec((1, s_len, d), lambda i, j: (i, 0, 0)),   # kv embedding
            pl.BlockSpec((1, d, dh), lambda i, j: (j, 0, 0)),      # wq (per head)
            pl.BlockSpec((1, 1, dh), lambda i, j: (j, 0, 0)),      # bq
            pl.BlockSpec((1, d, dh), lambda i, j: (j, 0, 0)),      # wk
            pl.BlockSpec((1, 1, dh), lambda i, j: (j, 0, 0)),      # bk
            pl.BlockSpec((1, d, dh), lambda i, j: (j, 0, 0)),      # wv
            pl.BlockSpec((1, 1, dh), lambda i, j: (j, 0, 0)),      # bv
            pl.BlockSpec((1, dh, d), lambda i, j: (j, 0, 0)),      # wo (per head)
            pl.BlockSpec((1, d), lambda i, j: (0, 0)),             # bo
            pl.BlockSpec((1, d), lambda i, j: (0, 0)),             # ln1 gamma
            pl.BlockSpec((1, d), lambda i, j: (0, 0)),             # ln1 beta
        ],
        out_specs=pl.BlockSpec((1, s_len, d), lambda i, j: (i, 0, 0)),
        scratch_shapes=[pltpu.VMEM((s_len, d), jnp.float32)],
        compiler_params=_cparams("parallel", "arbitrary"),
    )(x, kv_emb, p["wq"], p["bq"], p["wk"], p["bk"], p["wv"], p["bv"],
      p["wo"], p["bo"], p["ln1_g"], p["ln1_b"])


# --------------------------------------------------------------------------
# FFN + residual + LN2: the (tm, dim_feedforward) intermediate stays in VMEM.
# --------------------------------------------------------------------------

def _ffn_ln_kernel(x_ref, w1_ref, b1_ref, w2_ref, b2_ref, g_ref, b_ref,
                   o_ref, *, eps):
    x = x_ref[...]                                             # (tm, D) bf16
    h = jnp.dot(x, w1_ref[...], preferred_element_type=jnp.float32) + b1_ref[...]
    h = jnp.maximum(h, 0.0).astype(jnp.bfloat16)
    y = jnp.dot(h, w2_ref[...], preferred_element_type=jnp.float32) + b2_ref[...]
    y = y + x.astype(jnp.float32)
    o_ref[...] = _layer_norm_f32(y, g_ref[...], b_ref[...], eps).astype(o_ref.dtype)


def pallas_ffn_residual_ln(x, w1, b1, w2, b2, gamma, beta, eps):
    m, d = x.shape
    ff = w1.shape[1]
    tm = _pick_row_tile(m)
    # TODO(synk): tile dim_feedforward with a K-loop accumulator ("arbitrary"
    # axis) when d_model*dim_feedforward weights approach the VMEM budget.
    return pl.pallas_call(
        functools.partial(_ffn_ln_kernel, eps=eps),
        out_shape=jax.ShapeDtypeStruct((m, d), jnp.bfloat16),
        grid=(pl.cdiv(m, tm),),
        in_specs=[
            pl.BlockSpec((tm, d), lambda i: (i, 0)),
            pl.BlockSpec((d, ff), lambda i: (0, 0)),
            pl.BlockSpec((1, ff), lambda i: (0, 0)),
            pl.BlockSpec((ff, d), lambda i: (0, 0)),
            pl.BlockSpec((1, d), lambda i: (0, 0)),
            pl.BlockSpec((1, d), lambda i: (0, 0)),
            pl.BlockSpec((1, d), lambda i: (0, 0)),
        ],
        out_specs=pl.BlockSpec((tm, d), lambda i: (i, 0)),
        compiler_params=_cparams("parallel"),
    )(x, w1, b1, w2, b2, gamma, beta)


# --------------------------------------------------------------------------
# Final LayerNorm
# --------------------------------------------------------------------------

def _ln_kernel(x_ref, g_ref, b_ref, o_ref, *, eps):
    o_ref[...] = _layer_norm_f32(x_ref[...].astype(jnp.float32),
                                 g_ref[...], b_ref[...], eps).astype(o_ref.dtype)


def pallas_layernorm(x, gamma, beta, eps, out_dtype=jnp.float32):
    m, d = x.shape
    tm = _pick_row_tile(m)
    return pl.pallas_call(
        functools.partial(_ln_kernel, eps=eps),
        out_shape=jax.ShapeDtypeStruct((m, d), out_dtype),
        grid=(pl.cdiv(m, tm),),
        in_specs=[
            pl.BlockSpec((tm, d), lambda i: (i, 0)),
            pl.BlockSpec((1, d), lambda i: (0, 0)),
            pl.BlockSpec((1, d), lambda i: (0, 0)),
        ],
        out_specs=pl.BlockSpec((tm, d), lambda i: (i, 0)),
        compiler_params=_cparams("parallel"),
    )(x, gamma, beta)


# --------------------------------------------------------------------------
# Model glue (plain JAX: parameter plumbing and free reshapes only)
# --------------------------------------------------------------------------

def encoder_layer(x, kv_emb, p, *, eps):
    b, s_len, d = x.shape
    x2 = pallas_attention_block(x, kv_emb, p, eps=eps)          # (B, S, D) bf16
    x3 = pallas_ffn_residual_ln(x2.reshape(b * s_len, d),
                                p["w1"], p["b1"], p["w2"], p["b2"],
                                p["ln2_g"], p["ln2_b"], eps)     # (BS, D) bf16
    return x3.reshape(b, s_len, d)


def bayesformer_forward(src, params, *, eps):
    b, s_len, _ = src.shape
    d = params["q_emb_w"].shape[1]

    # Fused Query / Key-Value Bayesformer embeddings (PE + pos table fused).
    x, kv_emb = pallas_embeddings(src, params["q_emb_w"], params["kv_emb_w"],
                                  params["q_pos"], params["kv_pos"])

    for lp in params["layers"]:
        x = encoder_layer(x, kv_emb, lp, eps=eps)

    out = pallas_layernorm(x.reshape(b * s_len, d),
                           params["norm_g"], params["norm_b"], eps)
    return out.reshape(b, s_len, d)


# --------------------------------------------------------------------------
# Deterministic parameter initialization
# --------------------------------------------------------------------------

def sinusoidal_pe(max_len, d_model):
    pos = jnp.arange(max_len, dtype=jnp.float32)[:, None]
    div = jnp.exp(jnp.arange(0, d_model, 2, dtype=jnp.float32)
                  * (-math.log(10000.0) / d_model))
    pe = jnp.zeros((max_len, d_model), jnp.float32)
    pe = pe.at[:, 0::2].set(jnp.sin(pos * div))
    pe = pe.at[:, 1::2].set(jnp.cos(pos * div))
    return pe


def init_params(key, *, in_features, seq_len, d_model, num_heads,
                dim_feedforward, num_layers, max_length, sigma_init=-7.0):
    dh = d_model // num_heads
    keys = iter(jax.random.split(key, 256))

    def nk():
        return next(keys)

    def dense(fan_in, fan_out, scale=0.05):
        w = scale * jax.random.normal(nk(), (fan_in, fan_out), jnp.float32)
        b = jnp.zeros((fan_out,), jnp.float32)
        return w, b

    def bayes_dense(fan_in, fan_out):
        # w = mu + softplus(rho) * eps  (single deterministic weight sample)
        w_mu = 0.05 * jax.random.normal(nk(), (fan_in, fan_out), jnp.float32)
        sig = jax.nn.softplus(jnp.float32(sigma_init))
        w = w_mu + sig * jax.random.normal(nk(), (fan_in, fan_out), jnp.float32)
        b = sig * jax.random.normal(nk(), (fan_out,), jnp.float32)
        return w, b

    # ---- embeddings -------------------------------------------------------
    q_w, q_b = bayes_dense(in_features, d_model)
    emb_scale = math.sqrt(d_model)             # fold `* sqrt(d_model)` into weights
    q_w, q_b = q_w * emb_scale, q_b * emb_scale
    kv_w, kv_b = bayes_dense(in_features, d_model)

    pe = sinusoidal_pe(max_length, d_model)[:seq_len]
    kv_tab = 0.05 * jax.random.normal(nk(), (seq_len, d_model), jnp.float32)

    # ---- encoder layers ---------------------------------------------------
    att_scale = 1.0 / math.sqrt(dh)            # fold softmax scale into Wq/bq

    def heads_out(w, b):
        # split output columns by head -> (H, D, dh) / (H, 1, dh)
        wh = w.reshape(d_model, num_heads, dh).transpose(1, 0, 2)
        bh = b.reshape(num_heads, 1, dh)
        return wh.astype(jnp.bfloat16), bh

    layers = []
    for _ in range(num_layers):
        wq, bq = dense(d_model, d_model)
        wk, bk = dense(d_model, d_model)
        wv, bv = dense(d_model, d_model)
        wo, bo = dense(d_model, d_model)
        w1, b1 = dense(d_model, dim_feedforward)
        w2, b2 = dense(dim_feedforward, d_model)

        wq_h, bq_h = heads_out(wq * att_scale, bq * att_scale)
        wk_h, bk_h = heads_out(wk, bk)
        wv_h, bv_h = heads_out(wv, bv)

        layers.append(dict(
            wq=wq_h, bq=bq_h, wk=wk_h, bk=bk_h, wv=wv_h, bv=bv_h,
            wo=wo.reshape(num_heads, dh, d_model).astype(jnp.bfloat16),
            bo=bo.reshape(1, d_model),
            w1=w1.astype(jnp.bfloat16), b1=b1.reshape(1, dim_feedforward),
            w2=w2.astype(jnp.bfloat16), b2=b2.reshape(1, d_model),
            ln1_g=jnp.ones((1, d_model), jnp.float32),
            ln1_b=jnp.zeros((1, d_model), jnp.float32),
            ln2_g=jnp.ones((1, d_model), jnp.float32),
            ln2_b=jnp.zeros((1, d_model), jnp.float32),
        ))

    return dict(
        q_emb_w=q_w.astype(jnp.bfloat16),
        kv_emb_w=kv_w.astype(jnp.bfloat16),
        q_pos=pe + q_b[None, :],        # sinusoidal PE + (scaled) query bias
        kv_pos=kv_tab + kv_b[None, :],  # learned positional table + kv bias
        norm_g=jnp.ones((1, d_model), jnp.float32),
        norm_b=jnp.zeros((1, d_model), jnp.float32),
        layers=layers,
    )


# --------------------------------------------------------------------------
# Main
# --------------------------------------------------------------------------

if __name__ == "__main__":
    # Small shapes consistent with the module's constructor arguments.
    batch = 2
    seq_len = 8
    in_features = 8
    d_model = 32
    num_heads = 4
    dim_feedforward = 64
    num_encoder_layers = 2
    layer_norm_eps = 1e-5
    max_length = 64

    key = jax.random.PRNGKey(0)
    k_param, k_src = jax.random.split(key)

    params = init_params(
        k_param,
        in_features=in_features, seq_len=seq_len, d_model=d_model,
        num_heads=num_heads, dim_feedforward=dim_feedforward,
        num_layers=num_encoder_layers, max_length=max_length,
    )
    src = jax.random.normal(k_src, (batch, seq_len, in_features), jnp.float32)

    fwd = jax.jit(functools.partial(bayesformer_forward, eps=layer_norm_eps))
    out = jax.block_until_ready(fwd(src, params))

    assert out.shape == (batch, seq_len, d_model)
    assert bool(jnp.all(jnp.isfinite(out)))
    print("KERNEL_OK")
</pallas_src>

<mosaic_0001>
module attributes {stable_mosaic.version = 11 : i64} {
  func.func @_attn_block_kernel(%arg0: i32, %arg1: i32, %arg2: memref<1x8x32xbf16, #tpu.memory_space<vmem>>, %arg3: memref<1x8x32xbf16, #tpu.memory_space<vmem>>, %arg4: memref<1x32x8xbf16, #tpu.memory_space<vmem>>, %arg5: memref<1x1x8xf32, #tpu.memory_space<vmem>>, %arg6: memref<1x32x8xbf16, #tpu.memory_space<vmem>>, %arg7: memref<1x1x8xf32, #tpu.memory_space<vmem>>, %arg8: memref<1x32x8xbf16, #tpu.memory_space<vmem>>, %arg9: memref<1x1x8xf32, #tpu.memory_space<vmem>>, %arg10: memref<1x8x32xbf16, #tpu.memory_space<vmem>>, %arg11: memref<1x32xf32, #tpu.memory_space<vmem>>, %arg12: memref<1x32xf32, #tpu.memory_space<vmem>>, %arg13: memref<1x32xf32, #tpu.memory_space<vmem>>, %arg14: memref<1x8x32xbf16, #tpu.memory_space<vmem>>, %arg15: memref<8x32xf32, #tpu.memory_space<vmem>>) attributes {dimension_semantics = [#tpu.dimension_semantics<parallel>, #tpu.dimension_semantics<arbitrary>], iteration_bounds = array<i64: 2, 4>, scalar_prefetch = 0 : i64, scratch_operands = 1 : i64, tpu.core_type = #tpu.core_type<tc>, window_params = [{transform_indices = @transform_0, window_bounds = array<i64: 1, 8, 32>}, {transform_indices = @transform_1, window_bounds = array<i64: 1, 8, 32>}, {transform_indices = @transform_2, window_bounds = array<i64: 1, 32, 8>}, {transform_indices = @transform_3, window_bounds = array<i64: 1, 1, 8>}, {transform_indices = @transform_4, window_bounds = array<i64: 1, 32, 8>}, {transform_indices = @transform_5, window_bounds = array<i64: 1, 1, 8>}, {transform_indices = @transform_6, window_bounds = array<i64: 1, 32, 8>}, {transform_indices = @transform_7, window_bounds = array<i64: 1, 1, 8>}, {transform_indices = @transform_8, window_bounds = array<i64: 1, 8, 32>}, {pipeline_mode = #tpu.pipeline_mode<synchronous>, transform_indices = @transform_9, window_bounds = array<i64: 1, 32>}, {pipeline_mode = #tpu.pipeline_mode<synchronous>, transform_indices = @transform_10, window_bounds = array<i64: 1, 32>}, {pipeline_mode = #tpu.pipeline_mode<synchronous>, transform_indices = @transform_11, window_bounds = array<i64: 1, 32>}, {transform_indices = @transform_12, window_bounds = array<i64: 1, 8, 32>}]} {
    %c0_i32 = arith.constant 0 : i32
    %0 = arith.cmpi eq, %arg1, %c0_i32 : i32
    %1 = arith.extui %0 : i1 to i32
    %c0_i32_0 = arith.constant 0 : i32
    %2 = arith.cmpi ne, %1, %c0_i32_0 : i32
    scf.if %2 {
      %cst_39 = arith.constant 0.000000e+00 : f32
      %54 = vector.broadcast %cst_39 : f32 to vector<8x32xf32>
      %c0_40 = arith.constant 0 : index
      %c0_41 = arith.constant 0 : index
      %55 = vector.load %arg15[%c0_40, %c0_41] : memref<8x32xf32, #tpu.memory_space<vmem>>, vector<8x32xf32>
      tpu.vector_store %arg15[%c0_40, %c0_41], %54 {strides = array<i32>} : memref<8x32xf32, #tpu.memory_space<vmem>>, vector<8x32xf32>,
    } else {
    }
    %c0 = arith.constant 0 : index
    %c0_1 = arith.constant 0 : index
    %c0_2 = arith.constant 0 : index
    %3 = vector.load %arg2[%c0, %c0_1, %c0_2] : memref<1x8x32xbf16, #tpu.memory_space<vmem>>, vector<1x8x32xbf16>
    %4 = vector.shape_cast %3 : vector<1x8x32xbf16> to vector<8x32xbf16>
    %c0_3 = arith.constant 0 : index
    %c0_4 = arith.constant 0 : index
    %c0_5 = arith.constant 0 : index
    %5 = vector.load %arg3[%c0_3, %c0_4, %c0_5] : memref<1x8x32xbf16, #tpu.memory_space<vmem>>, vector<1x8x32xbf16>
    %6 = vector.shape_cast %5 : vector<1x8x32xbf16> to vector<8x32xbf16>
    %c0_6 = arith.constant 0 : index
    %c0_7 = arith.constant 0 : index
    %c0_8 = arith.constant 0 : index
    %7 = vector.load %arg4[%c0_6, %c0_7, %c0_8] : memref<1x32x8xbf16, #tpu.memory_space<vmem>>, vector<1x32x8xbf16>
    %8 = vector.shape_cast %7 : vector<1x32x8xbf16> to vector<32x8xbf16>
    %cst = arith.constant dense<0.000000e+00> : vector<8x8xf32>
    %9 = tpu.matmul %4, %8, %cst {dimension_numbers = #tpu.dot_dimension_numbers<[1], [0], [0], [1], [0, 0, 1, 1], [], []>} : vector<8x32xbf16>, vector<32x8xbf16>, vector<8x8xf32> -> vector<8x8xf32>
    %c0_9 = arith.constant 0 : index
    %c0_10 = arith.constant 0 : index
    %c0_11 = arith.constant 0 : index
    %10 = vector.load %arg5[%c0_9, %c0_10, %c0_11] : memref<1x1x8xf32, #tpu.memory_space<vmem>>, vector<1x1x8xf32>
    %11 = vector.shape_cast %10 : vector<1x1x8xf32> to vector<1x8xf32>
    %12 = vector.broadcast %11 : vector<1x8xf32> to vector<8x8xf32>
    %13 = arith.addf %9, %12 : vector<8x8xf32>
    %14 = arith.truncf %13 : vector<8x8xf32> to vector<8x8xbf16>
    %c0_12 = arith.constant 0 : index
    %c0_13 = arith.constant 0 : index
    %c0_14 = arith.constant 0 : index
    %15 = vector.load %arg6[%c0_12, %c0_13, %c0_14] : memref<1x32x8xbf16, #tpu.memory_space<vmem>>, vector<1x32x8xbf16>
    %16 = vector.shape_cast %15 : vector<1x32x8xbf16> to vector<32x8xbf16>
    %cst_15 = arith.constant dense<0.000000e+00> : vector<8x8xf32>
    %17 = tpu.matmul %6, %16, %cst_15 {dimension_numbers = #tpu.dot_dimension_numbers<[1], [0], [0], [1], [0, 0, 1, 1], [], []>} : vector<8x32xbf16>, vector<32x8xbf16>, vector<8x8xf32> -> vector<8x8xf32>
    %c0_16 = arith.constant 0 : index
    %c0_17 = arith.constant 0 : index
    %c0_18 = arith.constant 0 : index
    %18 = vector.load %arg7[%c0_16, %c0_17, %c0_18] : memref<1x1x8xf32, #tpu.memory_space<vmem>>, vector<1x1x8xf32>
    %19 = vector.shape_cast %18 : vector<1x1x8xf32> to vector<1x8xf32>
    %20 = vector.broadcast %19 : vector<1x8xf32> to vector<8x8xf32>
    %21 = arith.addf %17, %20 : vector<8x8xf32>
    %22 = arith.truncf %21 : vector<8x8xf32> to vector<8x8xbf16>
    %c0_19 = arith.constant 0 : index
    %c0_20 = arith.constant 0 : index
    %c0_21 = arith.constant 0 : index
    %23 = vector.load %arg8[%c0_19, %c0_20, %c0_21] : memref<1x32x8xbf16, #tpu.memory_space<vmem>>, vector<1x32x8xbf16>
    %24 = vector.shape_cast %23 : vector<1x32x8xbf16> to vector<32x8xbf16>
    %cst_22 = arith.constant dense<0.000000e+00> : vector<8x8xf32>
    %25 = tpu.matmul %6, %24, %cst_22 {dimension_numbers = #tpu.dot_dimension_numbers<[1], [0], [0], [1], [0, 0, 1, 1], [], []>} : vector<8x32xbf16>, vector<32x8xbf16>, vector<8x8xf32> -> vector<8x8xf32>
    %c0_23 = arith.constant 0 : index
    %c0_24 = arith.constant 0 : index
    %c0_25 = arith.constant 0 : index
    %26 = vector.load %arg9[%c0_23, %c0_24, %c0_25] : memref<1x1x8xf32, #tpu.memory_space<vmem>>, vector<1x1x8xf32>
    %27 = vector.shape_cast %26 : vector<1x1x8xf32> to vector<1x8xf32>
    %28 = vector.broadcast %27 : vector<1x8xf32> to vector<8x8xf32>
    %29 = arith.addf %25, %28 : vector<8x8xf32>
    %30 = arith.truncf %29 : vector<8x8xf32> to vector<8x8xbf16>
    %cst_26 = arith.constant dense<0.000000e+00> : vector<8x8xf32>
    %31 = tpu.matmul %14, %22, %cst_26 {dimension_numbers = #tpu.dot_dimension_numbers<[1], [1], [0], [0], [0, 0, 1, 0], [], []>} : vector<8x8xbf16>, vector<8x8xbf16>, vector<8x8xf32> -> vector<8x8xf32>
    %cst_27 = arith.constant dense<0xFF800000> : vector<8xf32>
    %32 = vector.multi_reduction <maximumf>, %31, %cst_27 [1] : vector<8x8xf32> to vector<8xf32>
    %33 = vector.shape_cast %32 : vector<8xf32> to vector<8x1xf32>
    %34 = vector.broadcast %33 : vector<8x1xf32> to vector<8x8xf32>
    %35 = arith.subf %31, %34 : vector<8x8xf32>
    %36 = math.exp %35 : vector<8x8xf32>
    %cst_28 = arith.constant dense<0.000000e+00> : vector<8xf32>
    %37 = vector.multi_reduction <add>, %36, %cst_28 [1] : vector<8x8xf32> to vector<8xf32>
    %38 = vector.shape_cast %37 : vector<8xf32> to vector<8x1xf32>
    %39 = tpu.reciprocal %38 {approx = true} : vector<8x1xf32> -> vector<8x1xf32>
    %40 = arith.truncf %36 : vector<8x8xf32> to vector<8x8xbf16>
    %cst_29 = arith.constant dense<0.000000e+00> : vector<8x8xf32>
    %41 = tpu.matmul %40, %30, %cst_29 {dimension_numbers = #tpu.dot_dimension_numbers<[1], [0], [0], [1], [0, 0, 1, 1], [], []>} : vector<8x8xbf16>, vector<8x8xbf16>, vector<8x8xf32> -> vector<8x8xf32>
    %42 = vector.broadcast %39 : vector<8x1xf32> to vector<8x8xf32>
    %43 = arith.mulf %41, %42 : vector<8x8xf32>
    %44 = arith.truncf %43 : vector<8x8xf32> to vector<8x8xbf16>
    %c0_30 = arith.constant 0 : index
    %c0_31 = arith.constant 0 : index
    %45 = vector.load %arg15[%c0_30, %c0_31] : memref<8x32xf32, #tpu.memory_space<vmem>>, vector<8x32xf32>
    %c0_32 = arith.constant 0 : index
    %c0_33 = arith.constant 0 : index
    %c0_34 = arith.constant 0 : index
    %46 = vector.load %arg10[%c0_32, %c0_33, %c0_34] : memref<1x8x32xbf16, #tpu.memory_space<vmem>>, vector<1x8x32xbf16>
    %47 = vector.shape_cast %46 : vector<1x8x32xbf16> to vector<8x32xbf16>
    %cst_35 = arith.constant dense<0.000000e+00> : vector<8x32xf32>
    %48 = tpu.matmul %44, %47, %cst_35 {dimension_numbers = #tpu.dot_dimension_numbers<[1], [0], [0], [1], [0, 0, 1, 1], [], []>} : vector<8x8xbf16>, vector<8x32xbf16>, vector<8x32xf32> -> vector<8x32xf32>
    %49 = arith.addf %45, %48 : vector<8x32xf32>
    %c0_36 = arith.constant 0 : index
    %c0_37 = arith.constant 0 : index
    %50 = vector.load %arg15[%c0_36, %c0_37] : memref<8x32xf32, #tpu.memory_space<vmem>>, vector<8x32xf32>
    tpu.vector_store %arg15[%c0_36, %c0_37], %49 {strides = array<i32>} : memref<8x32xf32, #tpu.memory_space<vmem>>, vector<8x32xf32>,
    %c3_i32 = arith.constant 3 : i32
    %51 = arith.cmpi eq, %arg1, %c3_i32 : i32
    %52 = arith.extui %51 : i1 to i32
    %c0_i32_38 = arith.constant 0 : i32
    %53 = arith.cmpi ne, %52, %c0_i32_38 : i32
    scf.if %53 {
      %c0_39 = arith.constant 0 : index
      %c0_40 = arith.constant 0 : index
      %54 = vector.load %arg15[%c0_39, %c0_40] : memref<8x32xf32, #tpu.memory_space<vmem>>, vector<8x32xf32>
      %c0_41 = arith.constant 0 : index
      %c0_42 = arith.constant 0 : index
      %55 = vector.load %arg11[%c0_41, %c0_42] : memref<1x32xf32, #tpu.memory_space<vmem>>, vector<1x32xf32>
      %56 = vector.broadcast %55 : vector<1x32xf32> to vector<8x32xf32>
      %57 = arith.addf %54, %56 : vector<8x32xf32>
      %58 = arith.extf %4 : vector<8x32xbf16> to vector<8x32xf32>
      %59 = arith.addf %57, %58 : vector<8x32xf32>
      %c0_43 = arith.constant 0 : index
      %c0_44 = arith.constant 0 : index
      %60 = vector.load %arg12[%c0_43, %c0_44] : memref<1x32xf32, #tpu.memory_space<vmem>>, vector<1x32xf32>
      %c0_45 = arith.constant 0 : index
      %c0_46 = arith.constant 0 : index
      %61 = vector.load %arg13[%c0_45, %c0_46] : memref<1x32xf32, #tpu.memory_space<vmem>>, vector<1x32xf32>
      %cst_47 = arith.constant dense<0.000000e+00> : vector<8xf32>
      %62 = vector.multi_reduction <add>, %59, %cst_47 [1] : vector<8x32xf32> to vector<8xf32>
      %63 = vector.shape_cast %62 : vector<8xf32> to vector<8x1xf32>
      %cst_48 = arith.constant 3.200000e+01 : f32
      %64 = vector.broadcast %cst_48 : f32 to vector<8x1xf32>
      %65 = arith.divf %63, %64 : vector<8x1xf32>
      %66 = vector.broadcast %65 : vector<8x1xf32> to vector<8x32xf32>
      %67 = arith.subf %59, %66 : vector<8x32xf32>
      %68 = arith.mulf %67, %67 : vector<8x32xf32>
      %cst_49 = arith.constant dense<0.000000e+00> : vector<8xf32>
      %69 = vector.multi_reduction <add>, %68, %cst_49 [1] : vector<8x32xf32> to vector<8xf32>
      %70 = vector.shape_cast %69 : vector<8xf32> to vector<8x1xf32>
      %cst_50 = arith.constant 3.200000e+01 : f32
      %71 = vector.broadcast %cst_50 : f32 to vector<8x1xf32>
      %72 = arith.divf %70, %71 : vector<8x1xf32>
      %cst_51 = arith.constant 9.99999974E-6 : f32
      %73 = vector.broadcast %cst_51 : f32 to vector<8x1xf32>
      %74 = arith.addf %72, %73 : vector<8x1xf32>
      %75 = math.rsqrt %74 : vector<8x1xf32>
      %76 = vector.broadcast %75 : vector<8x1xf32> to vector<8x32xf32>
      %77 = arith.mulf %67, %76 : vector<8x32xf32>
      %78 = vector.broadcast %60 : vector<1x32xf32> to vector<8x32xf32>
      %79 = arith.mulf %77, %78 : vector<8x32xf32>
      %80 = vector.broadcast %61 : vector<1x32xf32> to vector<8x32xf32>
      %81 = arith.addf %79, %80 : vector<8x32xf32>
      %82 = arith.truncf %81 : vector<8x32xf32> to vector<8x32xbf16>
      %c0_52 = arith.constant 0 : index
      %c0_53 = arith.constant 0 : index
      %c0_54 = arith.constant 0 : index
      %83 = vector.load %arg14[%c0_52, %c0_53, %c0_54] : memref<1x8x32xbf16, #tpu.memory_space<vmem>>, vector<1x8x32xbf16>
      %84 = vector.shape_cast %83 : vector<1x8x32xbf16> to vector<8x32xbf16>
      %85 = vector.shape_cast %82 : vector<8x32xbf16> to vector<1x8x32xbf16>
      tpu.vector_store %arg14[%c0_52, %c0_53, %c0_54], %85 {strides = array<i32>} : memref<1x8x32xbf16, #tpu.memory_space<vmem>>, vector<1x8x32xbf16>,
    } else {
    }
    return
  }
  func.func @transform_0(%arg0: i32, %arg1: i32) -> (i32, i32, i32) {
    %c0_i32 = arith.constant 0 : i32
    %c0_i32_0 = arith.constant 0 : i32
    %c0_i32_1 = arith.constant 0 : i32
    return %arg0, %c0_i32, %c0_i32_0 : i32, i32, i32
  }
  func.func @transform_1(%arg0: i32, %arg1: i32) -> (i32, i32, i32) {
    %c0_i32 = arith.constant 0 : i32
    %c0_i32_0 = arith.constant 0 : i32
    %c0_i32_1 = arith.constant 0 : i32
    return %arg0, %c0_i32, %c0_i32_0 : i32, i32, i32
  }
  func.func @transform_2(%arg0: i32, %arg1: i32) -> (i32, i32, i32) {
    %c0_i32 = arith.constant 0 : i32
    %c0_i32_0 = arith.constant 0 : i32
    %c0_i32_1 = arith.constant 0 : i32
    return %arg1, %c0_i32, %c0_i32_0 : i32, i32, i32
  }
  func.func @transform_3(%arg0: i32, %arg1: i32) -> (i32, i32, i32) {
    %c0_i32 = arith.constant 0 : i32
    %c0_i32_0 = arith.constant 0 : i32
    %c0_i32_1 = arith.constant 0 : i32
    return %arg1, %c0_i32, %c0_i32_0 : i32, i32, i32
  }
  func.func @transform_4(%arg0: i32, %arg1: i32) -> (i32, i32, i32) {
    %c0_i32 = arith.constant 0 : i32
    %c0_i32_0 = arith.constant 0 : i32
    %c0_i32_1 = arith.constant 0 : i32
    return %arg1, %c0_i32, %c0_i32_0 : i32, i32, i32
  }
  func.func @transform_5(%arg0: i32, %arg1: i32) -> (i32, i32, i32) {
    %c0_i32 = arith.constant 0 : i32
    %c0_i32_0 = arith.constant 0 : i32
    %c0_i32_1 = arith.constant 0 : i32
    return %arg1, %c0_i32, %c0_i32_0 : i32, i32, i32
  }
  func.func @transform_6(%arg0: i32, %arg1: i32) -> (i32, i32, i32) {
    %c0_i32 = arith.constant 0 : i32
    %c0_i32_0 = arith.constant 0 : i32
    %c0_i32_1 = arith.constant 0 : i32
    return %arg1, %c0_i32, %c0_i32_0 : i32, i32, i32
  }
  func.func @transform_7(%arg0: i32, %arg1: i32) -> (i32, i32, i32) {
    %c0_i32 = arith.constant 0 : i32
    %c0_i32_0 = arith.constant 0 : i32
    %c0_i32_1 = arith.constant 0 : i32
    return %arg1, %c0_i32, %c0_i32_0 : i32, i32, i32
  }
  func.func @transform_8(%arg0: i32, %arg1: i32) -> (i32, i32, i32) {
    %c0_i32 = arith.constant 0 : i32
    %c0_i32_0 = arith.constant 0 : i32
    %c0_i32_1 = arith.constant 0 : i32
    return %arg1, %c0_i32, %c0_i32_0 : i32, i32, i32
  }
  func.func @transform_9(%arg0: i32, %arg1: i32) -> (i32, i32) {
    %c0_i32 = arith.constant 0 : i32
    %c0_i32_0 = arith.constant 0 : i32
    %c0_i32_1 = arith.constant 0 : i32
    return %c0_i32, %c0_i32_0 : i32, i32
  }
  func.func @transform_10(%arg0: i32, %arg1: i32) -> (i32, i32) {
    %c0_i32 = arith.constant 0 : i32
    %c0_i32_0 = arith.constant 0 : i32
    %c0_i32_1 = arith.constant 0 : i32
    return %c0_i32, %c0_i32_0 : i32, i32
  }
  func.func @transform_11(%arg0: i32, %arg1: i32) -> (i32, i32) {
    %c0_i32 = arith.constant 0 : i32
    %c0_i32_0 = arith.constant 0 : i32
    %c0_i32_1 = arith.constant 0 : i32
    return %c0_i32, %c0_i32_0 : i32, i32
  }
  func.func @transform_12(%arg0: i32, %arg1: i32) -> (i32, i32, i32) {
    %c0_i32 = arith.constant 0 : i32
    %c0_i32_0 = arith.constant 0 : i32
    %c0_i32_1 = arith.constant 0 : i32
    return %arg0, %c0_i32, %c0_i32_0 : i32, i32, i32
  }
}

module attributes {stable_mosaic.version = 11 : i64} {
  func.func @_embed_kernel(%arg0: i32, %arg1: memref<1x8x8xf32, #tpu.memory_space<vmem>>, %arg2: memref<8x32xbf16, #tpu.memory_space<vmem>>, %arg3: memref<8x32xbf16, #tpu.memory_space<vmem>>, %arg4: memref<8x32xf32, #tpu.memory_space<vmem>>, %arg5: memref<8x32xf32, #tpu.memory_space<vmem>>, %arg6: memref<1x8x32xbf16, #tpu.memory_space<vmem>>, %arg7: memref<1x8x32xbf16, #tpu.memory_space<vmem>>) attributes {dimension_semantics = [#tpu.dimension_semantics<parallel>], iteration_bounds = array<i64: 2>, scalar_prefetch = 0 : i64, scratch_operands = 0 : i64, tpu.core_type = #tpu.core_type<tc>, window_params = [{transform_indices = @transform_0, window_bounds = array<i64: 1, 8, 8>}, {pipeline_mode = #tpu.pipeline_mode<synchronous>, transform_indices = @transform_1, window_bounds = array<i64: 8, 32>}, {pipeline_mode = #tpu.pipeline_mode<synchronous>, transform_indices = @transform_2, window_bounds = array<i64: 8, 32>}, {pipeline_mode = #tpu.pipeline_mode<synchronous>, transform_indices = @transform_3, window_bounds = array<i64: 8, 32>}, {pipeline_mode = #tpu.pipeline_mode<synchronous>, transform_indices = @transform_4, window_bounds = array<i64: 8, 32>}, {transform_indices = @transform_5, window_bounds = array<i64: 1, 8, 32>}, {transform_indices = @transform_6, window_bounds = array<i64: 1, 8, 32>}]} {
    %c0 = arith.constant 0 : index
    %c0_0 = arith.constant 0 : index
    %c0_1 = arith.constant 0 : index
    %0 = vector.load %arg1[%c0, %c0_0, %c0_1] : memref<1x8x8xf32, #tpu.memory_space<vmem>>, vector<1x8x8xf32>
    %1 = vector.shape_cast %0 : vector<1x8x8xf32> to vector<8x8xf32>
    %2 = arith.truncf %1 : vector<8x8xf32> to vector<8x8xbf16>
    %c0_2 = arith.constant 0 : index
    %c0_3 = arith.constant 0 : index
    %3 = vector.load %arg2[%c0_2, %c0_3] : memref<8x32xbf16, #tpu.memory_space<vmem>>, vector<8x32xbf16>
    %cst = arith.constant dense<0.000000e+00> : vector<8x32xf32>
    %4 = tpu.matmul %2, %3, %cst {dimension_numbers = #tpu.dot_dimension_numbers<[1], [0], [0], [1], [0, 0, 1, 1], [], []>} : vector<8x8xbf16>, vector<8x32xbf16>, vector<8x32xf32> -> vector<8x32xf32>
    %c0_4 = arith.constant 0 : index
    %c0_5 = arith.constant 0 : index
    %5 = vector.load %arg4[%c0_4, %c0_5] : memref<8x32xf32, #tpu.memory_space<vmem>>, vector<8x32xf32>
    %6 = arith.addf %4, %5 : vector<8x32xf32>
    %c0_6 = arith.constant 0 : index
    %c0_7 = arith.constant 0 : index
    %7 = vector.load %arg3[%c0_6, %c0_7] : memref<8x32xbf16, #tpu.memory_space<vmem>>, vector<8x32xbf16>
    %cst_8 = arith.constant dense<0.000000e+00> : vector<8x32xf32>
    %8 = tpu.matmul %2, %7, %cst_8 {dimension_numbers = #tpu.dot_dimension_numbers<[1], [0], [0], [1], [0, 0, 1, 1], [], []>} : vector<8x8xbf16>, vector<8x32xbf16>, vector<8x32xf32> -> vector<8x32xf32>
    %c0_9 = arith.constant 0 : index
    %c0_10 = arith.constant 0 : index
    %9 = vector.load %arg5[%c0_9, %c0_10] : memref<8x32xf32, #tpu.memory_space<vmem>>, vector<8x32xf32>
    %10 = arith.addf %8, %9 : vector<8x32xf32>
    %11 = arith.truncf %6 : vector<8x32xf32> to vector<8x32xbf16>
    %c0_11 = arith.constant 0 : index
    %c0_12 = arith.constant 0 : index
    %c0_13 = arith.constant 0 : index
    %12 = vector.load %arg6[%c0_11, %c0_12, %c0_13] : memref<1x8x32xbf16, #tpu.memory_space<vmem>>, vector<1x8x32xbf16>
    %13 = vector.shape_cast %12 : vector<1x8x32xbf16> to vector<8x32xbf16>
    %14 = vector.shape_cast %11 : vector<8x32xbf16> to vector<1x8x32xbf16>
    tpu.vector_store %arg6[%c0_11, %c0_12, %c0_13], %14 {strides = array<i32>} : memref<1x8x32xbf16, #tpu.memory_space<vmem>>, vector<1x8x32xbf16>,
    %15 = arith.truncf %10 : vector<8x32xf32> to vector<8x32xbf16>
    %c0_14 = arith.constant 0 : index
    %c0_15 = arith.constant 0 : index
    %c0_16 = arith.constant 0 : index
    %16 = vector.load %arg7[%c0_14, %c0_15, %c0_16] : memref<1x8x32xbf16, #tpu.memory_space<vmem>>, vector<1x8x32xbf16>
    %17 = vector.shape_cast %16 : vector<1x8x32xbf16> to vector<8x32xbf16>
    %18 = vector.shape_cast %15 : vector<8x32xbf16> to vector<1x8x32xbf16>
    tpu.vector_store %arg7[%c0_14, %c0_15, %c0_16], %18 {strides = array<i32>} : memref<1x8x32xbf16, #tpu.memory_space<vmem>>, vector<1x8x32xbf16>,
    return
  }
  func.func @transform_0(%arg0: i32) -> (i32, i32, i32) {
    %c0_i32 = arith.constant 0 : i32
    %c0_i32_0 = arith.constant 0 : i32
    %c0_i32_1 = arith.constant 0 : i32
    return %arg0, %c0_i32, %c0_i32_0 : i32, i32, i32
  }
  func.func @transform_1(%arg0: i32) -> (i32, i32) {
    %c0_i32 = arith.constant 0 : i32
    %c0_i32_0 = arith.constant 0 : i32
    %c0_i32_1 = arith.constant 0 : i32
    return %c0_i32, %c0_i32_0 : i32, i32
  }
  func.func @transform_2(%arg0: i32) -> (i32, i32) {
    %c0_i32 = arith.constant 0 : i32
    %c0_i32_0 = arith.constant 0 : i32
    %c0_i32_1 = arith.constant 0 : i32
    return %c0_i32, %c0_i32_0 : i32, i32
  }
  func.func @transform_3(%arg0: i32) -> (i32, i32) {
    %c0_i32 = arith.constant 0 : i32
    %c0_i32_0 = arith.constant 0 : i32
    %c0_i32_1 = arith.constant 0 : i32
    return %c0_i32, %c0_i32_0 : i32, i32
  }
  func.func @transform_4(%arg0: i32) -> (i32, i32) {
    %c0_i32 = arith.constant 0 : i32
    %c0_i32_0 = arith.constant 0 : i32
    %c0_i32_1 = arith.constant 0 : i32
    return %c0_i32, %c0_i32_0 : i32, i32
  }
  func.func @transform_5(%arg0: i32) -> (i32, i32, i32) {
    %c0_i32 = arith.constant 0 : i32
    %c0_i32_0 = arith.constant 0 : i32
    %c0_i32_1 = arith.constant 0 : i32
    return %arg0, %c0_i32, %c0_i32_0 : i32, i32, i32
  }
  func.func @transform_6(%arg0: i32) -> (i32, i32, i32) {
    %c0_i32 = arith.constant 0 : i32
    %c0_i32_0 = arith.constant 0 : i32
    %c0_i32_1 = arith.constant 0 : i32
    return %arg0, %c0_i32, %c0_i32_0 : i32, i32, i32
  }
}

module attributes {stable_mosaic.version = 11 : i64} {
  func.func @_ln_kernel(%arg0: i32, %arg1: memref<16x32xbf16, #tpu.memory_space<vmem>>, %arg2: memref<1x32xf32, #tpu.memory_space<vmem>>, %arg3: memref<1x32xf32, #tpu.memory_space<vmem>>, %arg4: memref<16x32xf32, #tpu.memory_space<vmem>>) attributes {dimension_semantics = [#tpu.dimension_semantics<parallel>], iteration_bounds = array<i64: 1>, scalar_prefetch = 0 : i64, scratch_operands = 0 : i64, tpu.core_type = #tpu.core_type<tc>, window_params = [{transform_indices = @transform_0, window_bounds = array<i64: 16, 32>}, {pipeline_mode = #tpu.pipeline_mode<synchronous>, transform_indices = @transform_1, window_bounds = array<i64: 1, 32>}, {pipeline_mode = #tpu.pipeline_mode<synchronous>, transform_indices = @transform_2, window_bounds = array<i64: 1, 32>}, {transform_indices = @transform_3, window_bounds = array<i64: 16, 32>}]} {
    %c0 = arith.constant 0 : index
    %c0_0 = arith.constant 0 : index
    %0 = vector.load %arg1[%c0, %c0_0] : memref<16x32xbf16, #tpu.memory_space<vmem>>, vector<16x32xbf16>
    %1 = arith.extf %0 : vector<16x32xbf16> to vector<16x32xf32>
    %c0_1 = arith.constant 0 : index
    %c0_2 = arith.constant 0 : index
    %2 = vector.load %arg2[%c0_1, %c0_2] : memref<1x32xf32, #tpu.memory_space<vmem>>, vector<1x32xf32>
    %c0_3 = arith.constant 0 : index
    %c0_4 = arith.constant 0 : index
    %3 = vector.load %arg3[%c0_3, %c0_4] : memref<1x32xf32, #tpu.memory_space<vmem>>, vector<1x32xf32>
    %cst = arith.constant dense<0.000000e+00> : vector<16xf32>
    %4 = vector.multi_reduction <add>, %1, %cst [1] : vector<16x32xf32> to vector<16xf32>
    %5 = vector.shape_cast %4 : vector<16xf32> to vector<16x1xf32>
    %cst_5 = arith.constant 3.200000e+01 : f32
    %6 = vector.broadcast %cst_5 : f32 to vector<16x1xf32>
    %7 = arith.divf %5, %6 : vector<16x1xf32>
    %8 = vector.broadcast %7 : vector<16x1xf32> to vector<16x32xf32>
    %9 = arith.subf %1, %8 : vector<16x32xf32>
    %10 = arith.mulf %9, %9 : vector<16x32xf32>
    %cst_6 = arith.constant dense<0.000000e+00> : vector<16xf32>
    %11 = vector.multi_reduction <add>, %10, %cst_6 [1] : vector<16x32xf32> to vector<16xf32>
    %12 = vector.shape_cast %11 : vector<16xf32> to vector<16x1xf32>
    %cst_7 = arith.constant 3.200000e+01 : f32
    %13 = vector.broadcast %cst_7 : f32 to vector<16x1xf32>
    %14 = arith.divf %12, %13 : vector<16x1xf32>
    %cst_8 = arith.constant 9.99999974E-6 : f32
    %15 = vector.broadcast %cst_8 : f32 to vector<16x1xf32>
    %16 = arith.addf %14, %15 : vector<16x1xf32>
    %17 = math.rsqrt %16 : vector<16x1xf32>
    %18 = vector.broadcast %17 : vector<16x1xf32> to vector<16x32xf32>
    %19 = arith.mulf %9, %18 : vector<16x32xf32>
    %20 = vector.broadcast %2 : vector<1x32xf32> to vector<16x32xf32>
    %21 = arith.mulf %19, %20 : vector<16x32xf32>
    %22 = vector.broadcast %3 : vector<1x32xf32> to vector<16x32xf32>
    %23 = arith.addf %21, %22 : vector<16x32xf32>
    %c0_9 = arith.constant 0 : index
    %c0_10 = arith.constant 0 : index
    %24 = vector.load %arg4[%c0_9, %c0_10] : memref<16x32xf32, #tpu.memory_space<vmem>>, vector<16x32xf32>
    tpu.vector_store %arg4[%c0_9, %c0_10], %23 {strides = array<i32>} : memref<16x32xf32, #tpu.memory_space<vmem>>, vector<16x32xf32>,
    return
  }
  func.func @transform_0(%arg0: i32) -> (i32, i32) {
    %c0_i32 = arith.constant 0 : i32
    %c0_i32_0 = arith.constant 0 : i32
    return %arg0, %c0_i32 : i32, i32
  }
  func.func @transform_1(%arg0: i32) -> (i32, i32) {
    %c0_i32 = arith.constant 0 : i32
    %c0_i32_0 = arith.constant 0 : i32
    %c0_i32_1 = arith.constant 0 : i32
    return %c0_i32, %c0_i32_0 : i32, i32
  }
  func.func @transform_2(%arg0: i32) -> (i32, i32) {
    %c0_i32 = arith.constant 0 : i32
    %c0_i32_0 = arith.constant 0 : i32
    %c0_i32_1 = arith.constant 0 : i32
    return %c0_i32, %c0_i32_0 : i32, i32
  }
  func.func @transform_3(%arg0: i32) -> (i32, i32) {
    %c0_i32 = arith.constant 0 : i32
    %c0_i32_0 = arith.constant 0 : i32
    return %arg0, %c0_i32 : i32, i32
  }
}

module attributes {stable_mosaic.version = 11 : i64} {
  func.func @_ffn_ln_kernel(%arg0: i32, %arg1: memref<16x32xbf16, #tpu.memory_space<vmem>>, %arg2: memref<32x64xbf16, #tpu.memory_space<vmem>>, %arg3: memref<1x64xf32, #tpu.memory_space<vmem>>, %arg4: memref<64x32xbf16, #tpu.memory_space<vmem>>, %arg5: memref<1x32xf32, #tpu.memory_space<vmem>>, %arg6: memref<1x32xf32, #tpu.memory_space<vmem>>, %arg7: memref<1x32xf32, #tpu.memory_space<vmem>>, %arg8: memref<16x32xbf16, #tpu.memory_space<vmem>>) attributes {dimension_semantics = [#tpu.dimension_semantics<parallel>], iteration_bounds = array<i64: 1>, scalar_prefetch = 0 : i64, scratch_operands = 0 : i64, tpu.core_type = #tpu.core_type<tc>, window_params = [{transform_indices = @transform_0, window_bounds = array<i64: 16, 32>}, {pipeline_mode = #tpu.pipeline_mode<synchronous>, transform_indices = @transform_1, window_bounds = array<i64: 32, 64>}, {pipeline_mode = #tpu.pipeline_mode<synchronous>, transform_indices = @transform_2, window_bounds = array<i64: 1, 64>}, {pipeline_mode = #tpu.pipeline_mode<synchronous>, transform_indices = @transform_3, window_bounds = array<i64: 64, 32>}, {pipeline_mode = #tpu.pipeline_mode<synchronous>, transform_indices = @transform_4, window_bounds = array<i64: 1, 32>}, {pipeline_mode = #tpu.pipeline_mode<synchronous>, transform_indices = @transform_5, window_bounds = array<i64: 1, 32>}, {pipeline_mode = #tpu.pipeline_mode<synchronous>, transform_indices = @transform_6, window_bounds = array<i64: 1, 32>}, {transform_indices = @transform_7, window_bounds = array<i64: 16, 32>}]} {
    %c0 = arith.constant 0 : index
    %c0_0 = arith.constant 0 : index
    %0 = vector.load %arg1[%c0, %c0_0] : memref<16x32xbf16, #tpu.memory_space<vmem>>, vector<16x32xbf16>
    %c0_1 = arith.constant 0 : index
    %c0_2 = arith.constant 0 : index
    %1 = vector.load %arg2[%c0_1, %c0_2] : memref<32x64xbf16, #tpu.memory_space<vmem>>, vector<32x64xbf16>
    %cst = arith.constant dense<0.000000e+00> : vector<16x64xf32>
    %2 = tpu.matmul %0, %1, %cst {dimension_numbers = #tpu.dot_dimension_numbers<[1], [0], [0], [1], [0, 0, 1, 1], [], []>} : vector<16x32xbf16>, vector<32x64xbf16>, vector<16x64xf32> -> vector<16x64xf32>
    %c0_3 = arith.constant 0 : index
    %c0_4 = arith.constant 0 : index
    %3 = vector.load %arg3[%c0_3, %c0_4] : memref<1x64xf32, #tpu.memory_space<vmem>>, vector<1x64xf32>
    %4 = vector.broadcast %3 : vector<1x64xf32> to vector<16x64xf32>
    %5 = arith.addf %2, %4 : vector<16x64xf32>
    %cst_5 = arith.constant 0.000000e+00 : f32
    %6 = vector.broadcast %cst_5 : f32 to vector<16x64xf32>
    %7 = arith.maximumf %5, %6 : vector<16x64xf32>
    %8 = arith.truncf %7 : vector<16x64xf32> to vector<16x64xbf16>
    %c0_6 = arith.constant 0 : index
    %c0_7 = arith.constant 0 : index
    %9 = vector.load %arg4[%c0_6, %c0_7] : memref<64x32xbf16, #tpu.memory_space<vmem>>, vector<64x32xbf16>
    %cst_8 = arith.constant dense<0.000000e+00> : vector<16x32xf32>
    %10 = tpu.matmul %8, %9, %cst_8 {dimension_numbers = #tpu.dot_dimension_numbers<[1], [0], [0], [1], [0, 0, 1, 1], [], []>} : vector<16x64xbf16>, vector<64x32xbf16>, vector<16x32xf32> -> vector<16x32xf32>
    %c0_9 = arith.constant 0 : index
    %c0_10 = arith.constant 0 : index
    %11 = vector.load %arg5[%c0_9, %c0_10] : memref<1x32xf32, #tpu.memory_space<vmem>>, vector<1x32xf32>
    %12 = vector.broadcast %11 : vector<1x32xf32> to vector<16x32xf32>
    %13 = arith.addf %10, %12 : vector<16x32xf32>
    %14 = arith.extf %0 : vector<16x32xbf16> to vector<16x32xf32>
    %15 = arith.addf %13, %14 : vector<16x32xf32>
    %c0_11 = arith.constant 0 : index
    %c0_12 = arith.constant 0 : index
    %16 = vector.load %arg6[%c0_11, %c0_12] : memref<1x32xf32, #tpu.memory_space<vmem>>, vector<1x32xf32>
    %c0_13 = arith.constant 0 : index
    %c0_14 = arith.constant 0 : index
    %17 = vector.load %arg7[%c0_13, %c0_14] : memref<1x32xf32, #tpu.memory_space<vmem>>, vector<1x32xf32>
    %cst_15 = arith.constant dense<0.000000e+00> : vector<16xf32>
    %18 = vector.multi_reduction <add>, %15, %cst_15 [1] : vector<16x32xf32> to vector<16xf32>
    %19 = vector.shape_cast %18 : vector<16xf32> to vector<16x1xf32>
    %cst_16 = arith.constant 3.200000e+01 : f32
    %20 = vector.broadcast %cst_16 : f32 to vector<16x1xf32>
    %21 = arith.divf %19, %20 : vector<16x1xf32>
    %22 = vector.broadcast %21 : vector<16x1xf32> to vector<16x32xf32>
    %23 = arith.subf %15, %22 : vector<16x32xf32>
    %24 = arith.mulf %23, %23 : vector<16x32xf32>
    %cst_17 = arith.constant dense<0.000000e+00> : vector<16xf32>
    %25 = vector.multi_reduction <add>, %24, %cst_17 [1] : vector<16x32xf32> to vector<16xf32>
    %26 = vector.shape_cast %25 : vector<16xf32> to vector<16x1xf32>
    %cst_18 = arith.constant 3.200000e+01 : f32
    %27 = vector.broadcast %cst_18 : f32 to vector<16x1xf32>
    %28 = arith.divf %26, %27 : vector<16x1xf32>
    %cst_19 = arith.constant 9.99999974E-6 : f32
    %29 = vector.broadcast %cst_19 : f32 to vector<16x1xf32>
    %30 = arith.addf %28, %29 : vector<16x1xf32>
    %31 = math.rsqrt %30 : vector<16x1xf32>
    %32 = vector.broadcast %31 : vector<16x1xf32> to vector<16x32xf32>
    %33 = arith.mulf %23, %32 : vector<16x32xf32>
    %34 = vector.broadcast %16 : vector<1x32xf32> to vector<16x32xf32>
    %35 = arith.mulf %33, %34 : vector<16x32xf32>
    %36 = vector.broadcast %17 : vector<1x32xf32> to vector<16x32xf32>
    %37 = arith.addf %35, %36 : vector<16x32xf32>
    %38 = arith.truncf %37 : vector<16x32xf32> to vector<16x32xbf16>
    %c0_20 = arith.constant 0 : index
    %c0_21 = arith.constant 0 : index
    %39 = vector.load %arg8[%c0_20, %c0_21] : memref<16x32xbf16, #tpu.memory_space<vmem>>, vector<16x32xbf16>
    tpu.vector_store %arg8[%c0_20, %c0_21], %38 {strides = array<i32>} : memref<16x32xbf16, #tpu.memory_space<vmem>>, vector<16x32xbf16>,
    return
  }
  func.func @transform_0(%arg0: i32) -> (i32, i32) {
    %c0_i32 = arith.constant 0 : i32
    %c0_i32_0 = arith.constant 0 : i32
    return %arg0, %c0_i32 : i32, i32
  }
  func.func @transform_1(%arg0: i32) -> (i32, i32) {
    %c0_i32 = arith.constant 0 : i32
    %c0_i32_0 = arith.constant 0 : i32
    %c0_i32_1 = arith.constant 0 : i32
    return %c0_i32, %c0_i32_0 : i32, i32
  }
  func.func @transform_2(%arg0: i32) -> (i32, i32) {
    %c0_i32 = arith.constant 0 : i32
    %c0_i32_0 = arith.constant 0 : i32
    %c0_i32_1 = arith.constant 0 : i32
    return %c0_i32, %c0_i32_0 : i32, i32
  }
  func.func @transform_3(%arg0: i32) -> (i32, i32) {
    %c0_i32 = arith.constant 0 : i32
    %c0_i32_0 = arith.constant 0 : i32
    %c0_i32_1 = arith.constant 0 : i32
    return %c0_i32, %c0_i32_0 : i32, i32
  }
  func.func @transform_4(%arg0: i32) -> (i32, i32) {
    %c0_i32 = arith.constant 0 : i32
    %c0_i32_0 = arith.constant 0 : i32
    %c0_i32_1 = arith.constant 0 : i32
    return %c0_i32, %c0_i32_0 : i32, i32
  }
  func.func @transform_5(%arg0: i32) -> (i32, i32) {
    %c0_i32 = arith.constant 0 : i32
    %c0_i32_0 = arith.constant 0 : i32
    %c0_i32_1 = arith.constant 0 : i32
    return %c0_i32, %c0_i32_0 : i32, i32
  }
  func.func @transform_6(%arg0: i32) -> (i32, i32) {
    %c0_i32 = arith.constant 0 : i32
    %c0_i32_0 = arith.constant 0 : i32
    %c0_i32_1 = arith.constant 0 : i32
    return %c0_i32, %c0_i32_0 : i32, i32
  }
  func.func @transform_7(%arg0: i32) -> (i32, i32) {
    %c0_i32 = arith.constant 0 : i32
    %c0_i32_0 = arith.constant 0 : i32
    return %arg0, %c0_i32 : i32, i32
  }
}

</mosaic_0001>

<llo_original>
// kernel: bayesformer_forward.6
$region0: #{bayesformer_forward.6}
  #allocation0 [shape = 'u32[]', space=smem, size = 0x4, offset = 0x4, fixed_abs, tag = 'smem constant byte address 0x4 - core index']
  #allocation1 [shape = 'u32[72,128]{1,0:T(1,128)}', space=vmem, size = 0x9000, scoped, tag = 'internal scratch']
  %s0 = inlined_call_operand.vmem [shape: f32[2,8,8], index: 0, kind: input, shape index: {}]
  %s1 = inlined_call_operand.vmem [shape: bf16[8,32], index: 1, kind: input, shape index: {}]
  %s2 = inlined_call_operand.hbm [shape: bf16[8,32], index: 2, kind: input, shape index: {}]
  %s3 = inlined_call_operand.hbm [shape: f32[8,32], index: 3, kind: input, shape index: {}]
  %s4 = inlined_call_operand.hbm [shape: f32[8,32], index: 4, kind: input, shape index: {}]
  %s5 = inlined_call_operand.vmem [shape: bf16[2,8,32], index: 5, kind: output, shape index: {0}]
  %s6 = inlined_call_operand.vmem [shape: bf16[2,8,32], index: 6, kind: output, shape index: {1}]
  %7 = xla_tuple %s5, %s6
  %s8 = sld [smem:[#allocation0]]
  $region73: #{bayesformer_forward.6} parent=0
    _
  %s10 = ssub.s32 1, %s8
  %s11 = scalar_select 0, %s10, %s8
  $region1: #{bayesformer_forward.6} parent=0
    #allocation2 [shape = 'u8[2048]{0}', space=vmem, size = 0x800, scoped, tag = 'input window, operand 2, single buffered']
    #allocation3 [shape = 's32[2]{0}', space=sflag, size = 0x8, scoped, tag = 'scoped memory for bayesformer_forward.6']
    #allocation4 [shape = 'u8[4096]{0}', space=vmem, size = 0x1000, scoped, tag = 'input window, operand 3, single buffered']
    #allocation5 [shape = 's32[1]{0}', space=sflag, size = 0x4, scoped, tag = 'scoped memory for bayesformer_forward.6']
    #allocation6 [shape = 'u8[4096]{0}', space=vmem, size = 0x1000, scoped, tag = 'input window, operand 4, single buffered']
    %12 = vsyncpa [#allocation3], 0
    %13 = vsyncpa [#allocation5], 0
    loop: start=0, step=1, limit=4
    $region2: #{bayesformer_forward.6} parent=1 // loop_pre_header
      _
    $region3: #{bayesformer_forward.6} parent=1 // loop_header
      %s15 = sphi 0, %s19
      %p16 = scmp.ge.s32.totalorder %s15, 4
      %s25 = sphi 0, %s27
      %s28 = sphi 0, %s25
      %s29 = sphi 0, %s28
      %s45 = sphi 0, %s29
      %s49 = sphi 0, %s49
      %s51 = sphi 0, %s49
      %s52 = sphi 0, %s51
      %s66 = sphi 0, %s52
      %s70 = sphi 0, %s70
      %s72 = sphi 0, %s70
      %s73 = sphi 0, %s72
      %s87 = sphi 0, %s73
      %s91 = sphi 0, %s91
      %s93 = sphi 0, %s91
      %s94 = sphi 0, %s93
      %s108 = sphi 0, %s94
      %s112 = sphi 0, %s112
      %s114 = sphi 0, %s112
      %s115 = sphi 0, %s114
      %s129 = sphi 0, %s115
      %s135 = sphi 0, %s137
      %s138 = sphi 0, %s135
      %s139 = sphi 0, %s138
      %s155 = sphi 0, %s139
      %s161 = sphi 0, %s163
      %s164 = sphi 0, %s161
      %s165 = sphi 0, %s164
      %s181 = sphi 0, %s165
    $region4: #{bayesformer_forward.6} parent=1 // loop_header_branch
      %18 = sbr.rel (%p16) target = $region8
    $region5: #{bayesformer_forward.6} parent=1 // loop_body
      %s20 = ssub.s32 %s15, 1
      %s21 = ssub.s32 %s15, 2
      %s22 = sadd.s32 %s15, 1
      %s23 = ssub.s32 %s15, %s22
      %p24 = scmp.eq.s32.totalorder %s23, 0
      %s26 = sadd.s32 %s25, 1
      %s27 = scalar_select %p24, %s25, %s26
      %p30 = pneg %p24
      %p31 = scmp.eq.s32.totalorder %s15, 1
      %p32 = por %p30, %p31
      %p33 = scmp.ne.s32.totalorder %s25, %s28
      %p34 = scmp.eq.s32.totalorder %s15, 0
      %p35 = por %p33, %p34
      %p36 = scmp.ne.s32.totalorder %s25, %s28
      %p37 = scmp.eq.s32.totalorder %s20, 1
      %p38 = por %p36, %p37
      %p39 = scmp.ne.s32.totalorder %s28, %s29
      %p40 = scmp.eq.s32.totalorder %s20, 0
      %p41 = por %p39, %p40
      %p42 = scmp.ne.s32.totalorder %s28, %s29
      %p43 = scmp.eq.s32.totalorder %s21, 1
      %p44 = por %p42, %p43
      %p46 = scmp.ne.s32.totalorder %s29, %s45
      %p47 = scmp.eq.s32.totalorder %s21, 0
      %p48 = por %p46, %p47
      %s50 = sadd.s32 %s49, 1
      %p53 = scmp.eq.s32.totalorder %s15, 1
      %p54 = scmp.ne.s32.totalorder %s49, %s51
      %p55 = scmp.eq.s32.totalorder %s15, 0
      %p56 = por %p54, %p55
      %p57 = scmp.ne.s32.totalorder %s49, %s51
      %p58 = scmp.eq.s32.totalorder %s20, 1
      %p59 = por %p57, %p58
      %p60 = scmp.ne.s32.totalorder %s51, %s52
      %p61 = scmp.eq.s32.totalorder %s20, 0
      %p62 = por %p60, %p61
      %p63 = scmp.ne.s32.totalorder %s51, %s52
      %p64 = scmp.eq.s32.totalorder %s21, 1
      %p65 = por %p63, %p64
      %p67 = scmp.ne.s32.totalorder %s52, %s66
      %p68 = scmp.eq.s32.totalorder %s21, 0
      %p69 = por %p67, %p68
      %s71 = sadd.s32 %s70, 1
      %p74 = scmp.eq.s32.totalorder %s15, 1
      %p75 = scmp.ne.s32.totalorder %s70, %s72
      %p76 = scmp.eq.s32.totalorder %s15, 0
      %p77 = por %p75, %p76
      %p78 = scmp.ne.s32.totalorder %s70, %s72
      %p79 = scmp.eq.s32.totalorder %s20, 1
      %p80 = por %p78, %p79
      %p81 = scmp.ne.s32.totalorder %s72, %s73
      %p82 = scmp.eq.s32.totalorder %s20, 0
      %p83 = por %p81, %p82
      %p84 = scmp.ne.s32.totalorder %s72, %s73
      %p85 = scmp.eq.s32.totalorder %s21, 1
      %p86 = por %p84, %p85
      %p88 = scmp.ne.s32.totalorder %s73, %s87
      %p89 = scmp.eq.s32.totalorder %s21, 0
      %p90 = por %p88, %p89
      %s92 = sadd.s32 %s91, 1
      %p95 = scmp.eq.s32.totalorder %s15, 1
      %p96 = scmp.ne.s32.totalorder %s91, %s93
      %p97 = scmp.eq.s32.totalorder %s15, 0
      %p98 = por %p96, %p97
      %p99 = scmp.ne.s32.totalorder %s91, %s93
      %p100 = scmp.eq.s32.totalorder %s20, 1
      %p101 = por %p99, %p100
      %p102 = scmp.ne.s32.totalorder %s93, %s94
      %p103 = scmp.eq.s32.totalorder %s20, 0
      %p104 = por %p102, %p103
      %p105 = scmp.ne.s32.totalorder %s93, %s94
      %p106 = scmp.eq.s32.totalorder %s21, 1
      %p107 = por %p105, %p106
      %p109 = scmp.ne.s32.totalorder %s94, %s108
      %p110 = scmp.eq.s32.totalorder %s21, 0
      %p111 = por %p109, %p110
      %s113 = sadd.s32 %s112, 1
      %p116 = scmp.eq.s32.totalorder %s15, 1
      %p117 = scmp.ne.s32.totalorder %s112, %s114
      %p118 = scmp.eq.s32.totalorder %s15, 0
      %p119 = por %p117, %p118
      %p120 = scmp.ne.s32.totalorder %s112, %s114
      %p121 = scmp.eq.s32.totalorder %s20, 1
      %p122 = por %p120, %p121
      %p123 = scmp.ne.s32.totalorder %s114, %s115
      %p124 = scmp.eq.s32.totalorder %s20, 0
      %p125 = por %p123, %p124
      %p126 = scmp.ne.s32.totalorder %s114, %s115
      %p127 = scmp.eq.s32.totalorder %s21, 1
      %p128 = por %p126, %p127
      %p130 = scmp.ne.s32.totalorder %s115, %s129
      %p131 = scmp.eq.s32.totalorder %s21, 0
      %p132 = por %p130, %p131
      %s133 = ssub.s32 %s15, %s22
      %p134 = scmp.eq.s32.totalorder %s133, 0
      %s136 = sadd.s32 %s135, 1
      %s137 = scalar_select %p134, %s135, %s136
      %p140 = pneg %p134
      %p141 = scmp.eq.s32.totalorder %s15, 1
      %p142 = por %p140, %p141
      %p143 = scmp.ne.s32.totalorder %s135, %s138
      %p144 = scmp.eq.s32.totalorder %s15, 0
      %p145 = por %p143, %p144
      %p146 = scmp.ne.s32.totalorder %s135, %s138
      %p147 = scmp.eq.s32.totalorder %s20, 1
      %p148 = por %p146, %p147
      %p149 = scmp.ne.s32.totalorder %s138, %s139
      %p150 = scmp.eq.s32.totalorder %s20, 0
      %p151 = por %p149, %p150
      %p152 = scmp.ne.s32.totalorder %s138, %s139
      %p153 = scmp.eq.s32.totalorder %s21, 1
      %p154 = por %p152, %p153
      %p156 = scmp.ne.s32.totalorder %s139, %s155
      %p157 = scmp.eq.s32.totalorder %s21, 0
      %p158 = por %p156, %p157
      %s159 = ssub.s32 %s15, %s22
      %p160 = scmp.eq.s32.totalorder %s159, 0
      %s162 = sadd.s32 %s161, 1
      %s163 = scalar_select %p160, %s161, %s162
      %p166 = pneg %p160
      %p167 = scmp.eq.s32.totalorder %s15, 1
      %p168 = por %p166, %p167
      %p169 = scmp.ne.s32.totalorder %s161, %s164
      %p170 = scmp.eq.s32.totalorder %s15, 0
      %p171 = por %p169, %p170
      %p172 = scmp.ne.s32.totalorder %s161, %s164
      %p173 = scmp.eq.s32.totalorder %s20, 1
      %p174 = por %p172, %p173
      %p175 = scmp.ne.s32.totalorder %s164, %s165
      %p176 = scmp.eq.s32.totalorder %s20, 0
      %p177 = por %p175, %p176
      %p178 = scmp.ne.s32.totalorder %s164, %s165
      %p179 = scmp.eq.s32.totalorder %s21, 1
      %p180 = por %p178, %p179
      %p182 = scmp.ne.s32.totalorder %s165, %s181
      %p183 = scmp.eq.s32.totalorder %s21, 0
      %p184 = por %p182, %p183
      %p185 = scmp.le.s32.totalorder 1, %s15
      %p186 = scmp.lt.s32.totalorder %s15, 3
      %p187 = pnand %p185, %p186
      %p188 = pneg %p187
      // Predicated region
      $region9: #{bayesformer_forward.6} parent=5 // pred_check
        _
      $region10: #{bayesformer_forward.6} parent=5 // pred_check_branch
        %190 = sbr.rel (%p187) target = $region12
      $region11: #{bayesformer_forward.6} parent=5 // pred_region
        %s191 = ssub.s32 %s15, 1
        // Predicated region
        $region13: #{bayesformer_forward.6} parent=11 // pred_check
          %p192 = pneg %p62
        $region14: #{bayesformer_forward.6} parent=11 // pred_check_branch
          %194 = sbr.rel (%p192) target = $region16
        $region15: #{bayesformer_forward.6} parent=11 // pred_region
          _
        $region16: #{bayesformer_forward.6} parent=11 // pred_fallthru
          _
        // Predicated region
        $region17: #{bayesformer_forward.6} parent=11 // pred_check
          %p195 = pneg %p83
        $region18: #{bayesformer_forward.6} parent=11 // pred_check_branch
          %197 = sbr.rel (%p195) target = $region20
        $region19: #{bayesformer_forward.6} parent=11 // pred_region
          %199 = vsyncadd [#allocation3], 0
          %s201 = sshll.u32 %s2, 4
          %s202 = int_to_ptr.hbm [resolvable:$true] %s201
          %s203 = sshll.u32 [#allocation2], 4
          %s204 = int_to_ptr.vmem [resolvable:$true] %s203
          %206 = dma.hbm_to_vmem [thread:$0]  %s202, 64, %s204, [#allocation3]
        $region20: #{bayesformer_forward.6} parent=11 // pred_fallthru
          _
        // Predicated region
        $region21: #{bayesformer_forward.6} parent=11 // pred_check
          %p207 = pneg %p104
        $region22: #{bayesformer_forward.6} parent=11 // pred_check_branch
          %209 = sbr.rel (%p207) target = $region24
        $region23: #{bayesformer_forward.6} parent=11 // pred_region
          %211 = vsyncadd [#allocation5], 0
          %s213 = sshll.u32 %s3, 4
          %s214 = int_to_ptr.hbm [resolvable:$true] %s213
          %s215 = sshll.u32 [#allocation4], 4
          %s216 = int_to_ptr.vmem [resolvable:$true] %s215
          %218 = dma.hbm_to_vmem [thread:$0]  %s214, 128, %s216, [#allocation5]
        $region24: #{bayesformer_forward.6} parent=11 // pred_fallthru
          _
        // Predicated region
        $region25: #{bayesformer_forward.6} parent=11 // pred_check
          %p219 = pneg %p125
        $region26: #{bayesformer_forward.6} parent=11 // pred_check_branch
          %221 = sbr.rel (%p219) target = $region28
        $region27: #{bayesformer_forward.6} parent=11 // pred_region
          %223 = vsyncadd [#allocation5], 0
          %s225 = sshll.u32 %s4, 4
          %s226 = int_to_ptr.hbm [resolvable:$true] %s225
          %s227 = sshll.u32 [#allocation6], 4
          %s228 = int_to_ptr.vmem [resolvable:$true] %s227
          %230 = dma.hbm_to_vmem [thread:$0]  %s226, 128, %s228, [#allocation5]
        $region28: #{bayesformer_forward.6} parent=11 // pred_fallthru
          _
      $region12: #{bayesformer_forward.6} parent=5 // pred_fallthru
        _
      %p231 = scmp.lt.s32.totalorder %s15, 2
      // Predicated region
      $region29: #{bayesformer_forward.6} parent=5 // pred_check
        %p232 = pneg %p231
      $region30: #{bayesformer_forward.6} parent=5 // pred_check_branch
        %234 = sbr.rel (%p232) target = $region32
      $region31: #{bayesformer_forward.6} parent=5 // pred_region
        // Predicated region
        $region33: #{bayesformer_forward.6} parent=31 // pred_check
          %p235 = pneg %p35
        $region34: #{bayesformer_forward.6} parent=31 // pred_check_branch
          %237 = sbr.rel (%p235) target = $region36
        $region35: #{bayesformer_forward.6} parent=31 // pred_region
          %p238 = scmp.lt.s32.totalorder %s15, 1
          %s239 = scalar_select %p238, %s15, 1
          %s240 = smul.addr %s239, 8
          %s241 = scalar_lea.vmem %s0, %s240
        $region36: #{bayesformer_forward.6} parent=31 // pred_fallthru
          _
      $region32: #{bayesformer_forward.6} parent=5 // pred_fallthru
        _
      %p242 = scmp.le.s32.totalorder 1, %s15
      %p243 = scmp.lt.s32.totalorder %s15, 3
      %p244 = pnand %p242, %p243
      %p245 = pneg %p244
      // Predicated region
      $region37: #{bayesformer_forward.6} parent=5 // pred_check
        _
      $region38: #{bayesformer_forward.6} parent=5 // pred_check_branch
        %247 = sbr.rel (%p244) target = $region40
      $region39: #{bayesformer_forward.6} parent=5 // pred_region
        %s248 = ssub.s32 %s15, 1
        // Predicated region
        $region41: #{bayesformer_forward.6} parent=39 // pred_check
          %p249 = pneg %p83
        $region42: #{bayesformer_forward.6} parent=39 // pred_check_branch
          %251 = sbr.rel (%p249) target = $region44
        $region43: #{bayesformer_forward.6} parent=39 // pred_region
          %253 = dma.done [#allocation3], 64
        $region44: #{bayesformer_forward.6} parent=39 // pred_fallthru
          _
        // Predicated region
        $region45: #{bayesformer_forward.6} parent=39 // pred_check
          %p254 = pneg %p104
        $region46: #{bayesformer_forward.6} parent=39 // pred_check_branch
          %256 = sbr.rel (%p254) target = $region48
        $region47: #{bayesformer_forward.6} parent=39 // pred_region
          %258 = dma.done [#allocation5], 128
        $region48: #{bayesformer_forward.6} parent=39 // pred_fallthru
          _
        // Predicated region
        $region49: #{bayesformer_forward.6} parent=39 // pred_check
          %p259 = pneg %p125
        $region50: #{bayesformer_forward.6} parent=39 // pred_check_branch
          %261 = sbr.rel (%p259) target = $region52
        $region51: #{bayesformer_forward.6} parent=39 // pred_region
          %263 = dma.done [#allocation5], 128
        $region52: #{bayesformer_forward.6} parent=39 // pred_fallthru
          _
        %p264 = scmp.lt.s32.totalorder %s20, 1
        %s265 = scalar_select %p264, %s20, 1
        %s266 = smul.addr %s265, 8
        %s267 = scalar_lea.vmem %s0, %s266
        %p268 = pneg %p41
        %p269 = pneg %p38
        %p270 = pneg %p62
        %p271 = pneg %p59
        %p272 = pneg %p83
        %p273 = pneg %p80
        %p274 = pneg %p104
        %p275 = pneg %p101
        %p276 = pneg %p125
        %p277 = pneg %p122
        %p278 = pneg %p151
        %p279 = pneg %p148
        %p280 = scmp.lt.s32.totalorder %s20, 1
        %s281 = scalar_select %p280, %s20, 1
        %s282 = smul.addr %s281, 4
        %s283 = scalar_lea.vmem %s5, %s282
        %p284 = pneg %p177
        %p285 = pneg %p174
        %p286 = scmp.lt.s32.totalorder %s20, 1
        %s287 = scalar_select %p286, %s20, 1
        %s288 = smul.addr %s287, 4
        %s289 = scalar_lea.vmem %s6, %s288
        %p290 = scmp.lt.s32.totalorder %s20, 1
        %s291 = scalar_select %p290, %s20, 1
        %s292 = smul.addr %s291, 8
        %s293 = scalar_lea.vmem %s0, %s292
        %p294 = scmp.lt.s32.totalorder %s20, 1
        %s295 = scalar_select %p294, %s20, 1
        %s296 = smul.addr %s295, 4
        %s297 = scalar_lea.vmem %s5, %s296
        %p298 = scmp.lt.s32.totalorder %s20, 1
        %s299 = scalar_select %p298, %s20, 1
        %s300 = smul.addr %s299, 4
        %s301 = scalar_lea.vmem %s6, %s300
        %v303 = vld [vmem:[%s293] sm:$0xff]
        %v304 = vpack.c.bf16 %v303, %v303
        %v305 = vld [vmem:[%s1] sm:$0xf]
        %v306 = vld [vmem:[#allocation4] sm:$0xff]
        %vm307 = vcmask 64512
        %v309 = vsel %vm307, %v304, 0
        %vm311 = vcmask 1043456
        %v313 = vsel %vm311, %v305, 0
        %315 = vmatpush.bf16.msra.mxu0 0
        %316 = vmatpush.bf16.msra.mxu0 0
        %317 = vmatpush.bf16.msra.mxu0 0
        %318 = vmatpush.bf16.msra.mxu0 0
        %319 = vmatpush.bf16.msra.mxu0 0
        %320 = vmatpush.bf16.msra.mxu0 0
        %321 = vmatpush.bf16.msra.mxu0 0
        %322 = vmatpush.bf16.msra.mxu0 %v313
        %323 = vmatmul.bf16.gmra.mxu0 %v309
        %v324 = vpop.f32.mrf.mxu0
        %v325 = vadd.f32 %v306, %v324
        %v326 = vpop.f32.mrf.mxu0
        %327 = vdwg.mxu0
        %v328 = vld [vmem:[#allocation2] sm:$0xf]
        %v329 = vld [vmem:[#allocation6] sm:$0xff]
        %v331 = vsel %vm311, %v328, 0
        %333 = vmatpush.bf16.msra.mxu0 0
        %334 = vmatpush.bf16.msra.mxu0 0
        %335 = vmatpush.bf16.msra.mxu0 0
        %336 = vmatpush.bf16.msra.mxu0 0
        %337 = vmatpush.bf16.msra.mxu0 0
        %338 = vmatpush.bf16.msra.mxu0 0
        %339 = vmatpush.bf16.msra.mxu0 0
        %340 = vmatpush.bf16.msra.mxu0 %v331
        %341 = vmatmul.bf16.gmra.mxu0 %v309
        %v342 = vpop.f32.mrf.mxu0
        %v343 = vadd.f32 %v329, %v342
        %v344 = vpop.f32.mrf.mxu0
        %345 = vdwg.mxu0
        %v346 = vpack.c.bf16 %v325, %v325
        %vm347 = vcmask 257024
        %348 = vst.msk [vmem:[%s297] sm:$0xf] %vm347, %v346
        %v349 = vpack.c.bf16 %v343, %v343
        %350 = vst.msk [vmem:[%s301] sm:$0xf] %vm347, %v349
        %p351 = scmp.lt.s32.totalorder %s20, 1
        %s352 = scalar_select %p351, %s20, 1
        %s353 = smul.addr %s352, 4
        %s354 = scalar_lea.vmem %s5, %s353
        %p355 = scmp.lt.s32.totalorder %s20, 1
        %s356 = scalar_select %p355, %s20, 1
        %s357 = smul.addr %s356, 4
        %s358 = scalar_lea.vmem %s6, %s357
        // Predicated region
        $region53: #{bayesformer_forward.6} parent=39 // pred_check
          %p359 = pneg %p148
        $region54: #{bayesformer_forward.6} parent=39 // pred_check_branch
          %361 = sbr.rel (%p359) target = $region56
        $region55: #{bayesformer_forward.6} parent=39 // pred_region
          _
        $region56: #{bayesformer_forward.6} parent=39 // pred_fallthru
          _
        // Predicated region
        $region57: #{bayesformer_forward.6} parent=39 // pred_check
          %p362 = pneg %p174
        $region58: #{bayesformer_forward.6} parent=39 // pred_check_branch
          %364 = sbr.rel (%p362) target = $region60
        $region59: #{bayesformer_forward.6} parent=39 // pred_region
          _
        $region60: #{bayesformer_forward.6} parent=39 // pred_fallthru
          _
      $region40: #{bayesformer_forward.6} parent=5 // pred_fallthru
        _
      %p365 = scmp.le.s32.totalorder 2, %s15
      // Predicated region
      $region61: #{bayesformer_forward.6} parent=5 // pred_check
        %p366 = pneg %p365
      $region62: #{bayesformer_forward.6} parent=5 // pred_check_branch
        %368 = sbr.rel (%p366) target = $region64
      $region63: #{bayesformer_forward.6} parent=5 // pred_region
        %s369 = ssub.s32 %s15, 2
        // Predicated region
        $region65: #{bayesformer_forward.6} parent=63 // pred_check
          %p370 = pneg %p154
        $region66: #{bayesformer_forward.6} parent=63 // pred_check_branch
          %372 = sbr.rel (%p370) target = $region68
        $region67: #{bayesformer_forward.6} parent=63 // pred_region
          %p373 = scmp.lt.s32.totalorder %s21, 1
          %s374 = scalar_select %p373, %s21, 1
          %s375 = smul.addr %s374, 4
          %s376 = scalar_lea.vmem %s5, %s375
        $region68: #{bayesformer_forward.6} parent=63 // pred_fallthru
          _
        // Predicated region
        $region69: #{bayesformer_forward.6} parent=63 // pred_check
          %p377 = pneg %p180
        $region70: #{bayesformer_forward.6} parent=63 // pred_check_branch
          %379 = sbr.rel (%p377) target = $region72
        $region71: #{bayesformer_forward.6} parent=63 // pred_region
          %p380 = scmp.lt.s32.totalorder %s21, 1
          %s381 = scalar_select %p380, %s21, 1
          %s382 = smul.addr %s381, 4
          %s383 = scalar_lea.vmem %s6, %s382
        $region72: #{bayesformer_forward.6} parent=63 // pred_fallthru
          _
      $region64: #{bayesformer_forward.6} parent=5 // pred_fallthru
        _
    $region6: #{bayesformer_forward.6} parent=1 // loop_footer
      %s19 = sadd.s32 1, %s15
    $region7: #{bayesformer_forward.6} parent=1 // loop_footer_branch
      %14 = sbr.rel target = $region3
    $region8: #{bayesformer_forward.6} parent=1 // loop_exit
      _
    %384 = vsyncpa [#allocation3], 1
    %s385 = scalar_lea.sflag [#allocation3], 1
    %386 = vsyncpa %s385, 1
    %387 = vsyncpa [#allocation5], 1

// kernel: bayesformer_forward.11
$region0: #{bayesformer_forward.11}
  #allocation0 [shape = 'u32[]', space=smem, size = 0x4, offset = 0x4, fixed_abs, tag = 'smem constant byte address 0x4 - core index']
  #allocation1 [shape = 'u32[72,128]{1,0:T(1,128)}', space=vmem, size = 0x9000, scoped, tag = 'internal scratch']
  %s0 = inlined_call_operand.vmem [shape: bf16[16,32], index: 0, kind: input, shape index: {}]
  %s1 = inlined_call_operand.vmem [shape: f32[1,32], index: 1, kind: input, shape index: {}]
  %s2 = inlined_call_operand.vmem [shape: f32[1,32], index: 2, kind: input, shape index: {}]
  %s3 = inlined_call_operand.hbm [shape: f32[16,32], index: 3, kind: output, shape index: {}]
  %s4 = sld [smem:[#allocation0]]
  $region22: #{bayesformer_forward.11} parent=0
    _
  %s6 = ssub.s32 1, %s4
  %s7 = scalar_select 0, %s6, %s4
  $region1: #{bayesformer_forward.11} parent=0
    #allocation2 [shape = 'u8[8192]{0}', space=vmem, size = 0x2000, scoped, tag = 'output window, operand 0, single buffered']
    #allocation3 [shape = 's32[1]{0}', space=sflag, size = 0x4, scoped, tag = 'scoped memory for bayesformer_forward.11']
    %8 = vsyncpa [#allocation3], 0
    // Predicated region
    $region2: #{bayesformer_forward.11} parent=1 // pred_check
      _
    $region3: #{bayesformer_forward.11} parent=1 // pred_check_branch
      %10 = sbr.rel (0) target = $region5
    $region4: #{bayesformer_forward.11} parent=1 // pred_region
      _
    $region5: #{bayesformer_forward.11} parent=1 // pred_fallthru
      _
    // Predicated region
    $region6: #{bayesformer_forward.11} parent=1 // pred_check
      _
    $region7: #{bayesformer_forward.11} parent=1 // pred_check_branch
      %12 = sbr.rel (0) target = $region9
    $region8: #{bayesformer_forward.11} parent=1 // pred_region
      _
    $region9: #{bayesformer_forward.11} parent=1 // pred_fallthru
      _
    // Predicated region
    $region10: #{bayesformer_forward.11} parent=1 // pred_check
      _
    $region11: #{bayesformer_forward.11} parent=1 // pred_check_branch
      %14 = sbr.rel (0) target = $region13
    $region12: #{bayesformer_forward.11} parent=1 // pred_region
      _
    $region13: #{bayesformer_forward.11} parent=1 // pred_fallthru
      _
    %v15 = vld [vmem:[%s0] sm:$0xf]
    %v16 = vld [vmem:[%s0 + $0x4] sm:$0xf]
    %v17 = vunpack.c.l.bf16 %v15
    %v18 = vunpack.c.l.bf16 %v16
    %v19 = vld [vmem:[%s1] sm:$0x1]
    %v20 = vld [vmem:[%s2] sm:$0x1]
    %vm21 = vcmask 261120
    %v22 = vsel %vm21, %v17, 0.0
    %23 = vadd.xlane.f32.xlu0 %v22
    %v24 = vpop.xlane.xlu0 %23
    %v25 = vsel %vm21, %v18, 0.0
    %26 = vadd.xlane.f32.xlu0 %v25
    %v27 = vpop.xlane.xlu0 %26
    %v28 = vrcp.pop 32.0
    %v29 = vmul.f32 32.0, %v28
    %v30 = vsub.f32 1.0, %v29
    %v31 = vmul.f32 %v28, %v30
    %v32 = vadd.f32 %v28, %v31
    %vm33 = vweird.f32 %v28
    %v34 = vsel %vm33, %v28, %v32
    %v35 = vmul.f32 %v24, %v34
    %v36 = vmul.f32 %v27, %v34
    %v37 = vsub.f32 %v17, %v35
    %v38 = vsub.f32 %v18, %v36
    %v39 = vmul.f32 %v37, %v37
    %v40 = vmul.f32 %v38, %v38
    %v41 = vsel %vm21, %v39, 0.0
    %42 = vadd.xlane.f32.xlu0 %v41
    %v43 = vpop.xlane.xlu0 %42
    %v44 = vsel %vm21, %v40, 0.0
    %45 = vadd.xlane.f32.xlu0 %v44
    %v46 = vpop.xlane.xlu0 %45
    %v47 = vmul.f32 %v43, %v34
    %v48 = vmul.f32 %v46, %v34
    %v49 = vadd.f32 %v47, 1e-05
    %v50 = vadd.f32 %v48, 1e-05
    %v51 = vrsqrt.pop %v49
    %v52 = vmul.f32 %v51, %v49
    %v53 = vmul.f32 %v52, %v51
    %v54 = vmul.f32 0.5, %v53
    %v55 = vsub.f32 1.5, %v54
    %v56 = vmul.f32 %v51, %v55
    %vm57 = vweird.f32 %v49
    %vm58 = vweird.f32 %v51
    %vm59 = vmor %vm57, %vm58
    %v60 = vsel %vm59, %v51, %v56
    %v61 = vrsqrt.pop %v50
    %v62 = vmul.f32 %v61, %v50
    %v63 = vmul.f32 %v62, %v61
    %v64 = vmul.f32 0.5, %v63
    %v65 = vsub.f32 1.5, %v64
    %v66 = vmul.f32 %v61, %v65
    %vm67 = vweird.f32 %v50
    %vm68 = vweird.f32 %v61
    %vm69 = vmor %vm67, %vm68
    %v70 = vsel %vm69, %v61, %v66
    %v71 = vmul.f32 %v37, %v60
    %v72 = vmul.f32 %v38, %v70
    %v74 = vperm.slane %v19, 0
    %v76 = vmul.f32 %v71, %v74
    %v77 = vmul.f32 %v72, %v74
    %v79 = vperm.slane %v20, 0
    %v81 = vadd.f32 %v76, %v79
    %v82 = vadd.f32 %v77, %v79
    %83 = vst.msk [vmem:[#allocation2] sm:$0xff] %vm21, %v81
    %84 = vst.msk [vmem:[#allocation2 + $0x8] sm:$0xff] %vm21, %v82
    // Predicated region
    $region14: #{bayesformer_forward.11} parent=1 // pred_check
      _
    $region15: #{bayesformer_forward.11} parent=1 // pred_check_branch
      %86 = sbr.rel (0) target = $region17
    $region16: #{bayesformer_forward.11} parent=1 // pred_region
      %88 = vsyncadd [#allocation3], 0
      %s89 = sshll.u32 [#allocation2], 4
      %s90 = int_to_ptr.vmem [resolvable:$true] %s89
      %s91 = sshll.u32 %s3, 4
      %s92 = int_to_ptr.hbm [resolvable:$true] %s91
      %97 = dma.vmem_to_hbm [thread:$0]  %s90, 256, %s92, [#allocation3], 128, 128, 8
    $region17: #{bayesformer_forward.11} parent=1 // pred_fallthru
      _
    // Predicated region
    $region18: #{bayesformer_forward.11} parent=1 // pred_check
      _
    $region19: #{bayesformer_forward.11} parent=1 // pred_check_branch
      %99 = sbr.rel (0) target = $region21
    $region20: #{bayesformer_forward.11} parent=1 // pred_region
      %101 = dma.done [#allocation3], 256
    $region21: #{bayesformer_forward.11} parent=1 // pred_fallthru
      _
    %102 = vsyncpa [#allocation3], 1

// kernel: bayesformer_forward.7
$region0: #{bayesformer_forward.7}
  #allocation0 [shape = 'u32[]', space=smem, size = 0x4, offset = 0x4, fixed_abs, tag = 'smem constant byte address 0x4 - core index']
  #allocation1 [shape = 'u32[72,128]{1,0:T(1,128)}', space=vmem, size = 0x9000, scoped, tag = 'internal scratch']
  #allocation2 [shape = 'f32[8,32]{1,0:T(8,128)}', space=vmem, size = 0x1000, scoped, tag = 'scratch operand']
  %s0 = inlined_call_operand.vmem [shape: bf16[2,8,32], index: 0, kind: input, shape index: {}]
  %s1 = inlined_call_operand.vmem [shape: bf16[2,8,32], index: 1, kind: input, shape index: {}]
  %s2 = inlined_call_operand.vmem [shape: bf16[4,32,8], index: 2, kind: input, shape index: {}]
  %s3 = inlined_call_operand.vmem [shape: f32[4,1,8], index: 3, kind: input, shape index: {}]
  %s4 = inlined_call_operand.vmem [shape: bf16[4,32,8], index: 4, kind: input, shape index: {}]
  %s5 = inlined_call_operand.vmem [shape: f32[4,1,8], index: 5, kind: input, shape index: {}]
  %s6 = inlined_call_operand.vmem [shape: bf16[4,32,8], index: 6, kind: input, shape index: {}]
  %s7 = inlined_call_operand.vmem [shape: f32[4,1,8], index: 7, kind: input, shape index: {}]
  %s8 = inlined_call_operand.vmem [shape: bf16[4,8,32], index: 8, kind: input, shape index: {}]
  %s9 = inlined_call_operand.vmem [shape: f32[1,32], index: 9, kind: input, shape index: {}]
  %s10 = inlined_call_operand.vmem [shape: f32[1,32], index: 10, kind: input, shape index: {}]
  %s11 = inlined_call_operand.vmem [shape: f32[1,32], index: 11, kind: input, shape index: {}]
  %s12 = inlined_call_operand.vmem [shape: bf16[2,8,32], index: 12, kind: output, shape index: {}]
  %s13 = sld [smem:[#allocation0]]
  $region89: #{bayesformer_forward.7} parent=0
    _
  %s15 = ssub.s32 1, %s13
  %s16 = scalar_select 0, %s15, %s13
  loop: start=0, step=1, limit=10
  $region2: #{bayesformer_forward.7} parent=0 // loop_pre_header
    _
  $region3: #{bayesformer_forward.7} parent=0 // loop_header
    %s18 = sphi 0, %s22
    %p19 = scmp.ge.s32.totalorder %s18, 10
    %s25 = sphi 0, %s37
    %s26 = sphi 0, %s33
    %s27 = sphi 0, %s25
    %s28 = sphi 0, %s26
    %s29 = sphi 0, %s27
    %s30 = sphi 0, %s28
    %s40 = sphi 0, %s42
    %s43 = sphi 0, %s40
    %s44 = sphi 0, %s43
    %s60 = sphi 0, %s44
    %s66 = sphi 0, %s68
    %s69 = sphi 0, %s66
    %s70 = sphi 0, %s69
    %s86 = sphi 0, %s70
    %s92 = sphi 0, %s94
    %s95 = sphi 0, %s92
    %s96 = sphi 0, %s95
    %s112 = sphi 0, %s96
    %s118 = sphi 0, %s120
    %s121 = sphi 0, %s118
    %s122 = sphi 0, %s121
    %s138 = sphi 0, %s122
    %s144 = sphi 0, %s146
    %s147 = sphi 0, %s144
    %s148 = sphi 0, %s147
    %s164 = sphi 0, %s148
    %s170 = sphi 0, %s172
    %s173 = sphi 0, %s170
    %s174 = sphi 0, %s173
    %s190 = sphi 0, %s174
    %s196 = sphi 0, %s198
    %s199 = sphi 0, %s196
    %s200 = sphi 0, %s199
    %s216 = sphi 0, %s200
    %s222 = sphi 0, %s224
    %s225 = sphi 0, %s222
    %s226 = sphi 0, %s225
    %s242 = sphi 0, %s226
    %s248 = sphi 0, %s250
    %s251 = sphi 0, %s248
    %s252 = sphi 0, %s251
    %s268 = sphi 0, %s252
    %s272 = sphi 0, %s272
    %s274 = sphi 0, %s272
    %s275 = sphi 0, %s274
    %s289 = sphi 0, %s275
    %s293 = sphi 0, %s293
    %s295 = sphi 0, %s293
    %s296 = sphi 0, %s295
    %s310 = sphi 0, %s296
    %s314 = sphi 0, %s314
    %s316 = sphi 0, %s314
    %s317 = sphi 0, %s316
    %s331 = sphi 0, %s317
    %s337 = sphi 0, %s339
    %s340 = sphi 0, %s337
    %s341 = sphi 0, %s340
    %s357 = sphi 0, %s341
  $region4: #{bayesformer_forward.7} parent=0 // loop_header_branch
    %21 = sbr.rel (%p19) target = $region8
  $region5: #{bayesformer_forward.7} parent=0 // loop_body
    %s23 = ssub.s32 %s18, 1
    %s24 = ssub.s32 %s18, 2
    %s31 = sadd.s32 1, %s26
    %p32 = scmp.ge.s32.totalorder %s31, 4
    %s33 = scalar_select %p32, 0, %s31
    %s34 = sadd.s32 1, %s25
    %s35 = scalar_select %p32, %s34, %s25
    %p36 = scmp.ge.s32.totalorder %s35, 2
    %s37 = scalar_select %p36, 0, %s35
    %s38 = ssub.s32 %s25, %s37
    %p39 = scmp.eq.s32.totalorder %s38, 0
    %s41 = sadd.s32 %s40, 1
    %s42 = scalar_select %p39, %s40, %s41
    %p45 = pneg %p39
    %p46 = scmp.eq.s32.totalorder %s18, 7
    %p47 = por %p45, %p46
    %p48 = scmp.ne.s32.totalorder %s40, %s43
    %p49 = scmp.eq.s32.totalorder %s18, 0
    %p50 = por %p48, %p49
    %p51 = scmp.ne.s32.totalorder %s40, %s43
    %p52 = scmp.eq.s32.totalorder %s23, 7
    %p53 = por %p51, %p52
    %p54 = scmp.ne.s32.totalorder %s43, %s44
    %p55 = scmp.eq.s32.totalorder %s23, 0
    %p56 = por %p54, %p55
    %p57 = scmp.ne.s32.totalorder %s43, %s44
    %p58 = scmp.eq.s32.totalorder %s24, 7
    %p59 = por %p57, %p58
    %p61 = scmp.ne.s32.totalorder %s44, %s60
    %p62 = scmp.eq.s32.totalorder %s24, 0
    %p63 = por %p61, %p62
    %s64 = ssub.s32 %s25, %s37
    %p65 = scmp.eq.s32.totalorder %s64, 0
    %s67 = sadd.s32 %s66, 1
    %s68 = scalar_select %p65, %s66, %s67
    %p71 = pneg %p65
    %p72 = scmp.eq.s32.totalorder %s18, 7
    %p73 = por %p71, %p72
    %p74 = scmp.ne.s32.totalorder %s66, %s69
    %p75 = scmp.eq.s32.totalorder %s18, 0
    %p76 = por %p74, %p75
    %p77 = scmp.ne.s32.totalorder %s66, %s69
    %p78 = scmp.eq.s32.totalorder %s23, 7
    %p79 = por %p77, %p78
    %p80 = scmp.ne.s32.totalorder %s69, %s70
    %p81 = scmp.eq.s32.totalorder %s23, 0
    %p82 = por %p80, %p81
    %p83 = scmp.ne.s32.totalorder %s69, %s70
    %p84 = scmp.eq.s32.totalorder %s24, 7
    %p85 = por %p83, %p84
    %p87 = scmp.ne.s32.totalorder %s70, %s86
    %p88 = scmp.eq.s32.totalorder %s24, 0
    %p89 = por %p87, %p88
    %s90 = ssub.s32 %s26, %s33
    %p91 = scmp.eq.s32.totalorder %s90, 0
    %s93 = sadd.s32 %s92, 1
    %s94 = scalar_select %p91, %s92, %s93
    %p97 = pneg %p91
    %p98 = scmp.eq.s32.totalorder %s18, 7
    %p99 = por %p97, %p98
    %p100 = scmp.ne.s32.totalorder %s92, %s95
    %p101 = scmp.eq.s32.totalorder %s18, 0
    %p102 = por %p100, %p101
    %p103 = scmp.ne.s32.totalorder %s92, %s95
    %p104 = scmp.eq.s32.totalorder %s23, 7
    %p105 = por %p103, %p104
    %p106 = scmp.ne.s32.totalorder %s95, %s96
    %p107 = scmp.eq.s32.totalorder %s23, 0
    %p108 = por %p106, %p107
    %p109 = scmp.ne.s32.totalorder %s95, %s96
    %p110 = scmp.eq.s32.totalorder %s24, 7
    %p111 = por %p109, %p110
    %p113 = scmp.ne.s32.totalorder %s96, %s112
    %p114 = scmp.eq.s32.totalorder %s24, 0
    %p115 = por %p113, %p114
    %s116 = ssub.s32 %s26, %s33
    %p117 = scmp.eq.s32.totalorder %s116, 0
    %s119 = sadd.s32 %s118, 1
    %s120 = scalar_select %p117, %s118, %s119
    %p123 = pneg %p117
    %p124 = scmp.eq.s32.totalorder %s18, 7
    %p125 = por %p123, %p124
    %p126 = scmp.ne.s32.totalorder %s118, %s121
    %p127 = scmp.eq.s32.totalorder %s18, 0
    %p128 = por %p126, %p127
    %p129 = scmp.ne.s32.totalorder %s118, %s121
    %p130 = scmp.eq.s32.totalorder %s23, 7
    %p131 = por %p129, %p130
    %p132 = scmp.ne.s32.totalorder %s121, %s122
    %p133 = scmp.eq.s32.totalorder %s23, 0
    %p134 = por %p132, %p133
    %p135 = scmp.ne.s32.totalorder %s121, %s122
    %p136 = scmp.eq.s32.totalorder %s24, 7
    %p137 = por %p135, %p136
    %p139 = scmp.ne.s32.totalorder %s122, %s138
    %p140 = scmp.eq.s32.totalorder %s24, 0
    %p141 = por %p139, %p140
    %s142 = ssub.s32 %s26, %s33
    %p143 = scmp.eq.s32.totalorder %s142, 0
    %s145 = sadd.s32 %s144, 1
    %s146 = scalar_select %p143, %s144, %s145
    %p149 = pneg %p143
    %p150 = scmp.eq.s32.totalorder %s18, 7
    %p151 = por %p149, %p150
    %p152 = scmp.ne.s32.totalorder %s144, %s147
    %p153 = scmp.eq.s32.totalorder %s18, 0
    %p154 = por %p152, %p153
    %p155 = scmp.ne.s32.totalorder %s144, %s147
    %p156 = scmp.eq.s32.totalorder %s23, 7
    %p157 = por %p155, %p156
    %p158 = scmp.ne.s32.totalorder %s147, %s148
    %p159 = scmp.eq.s32.totalorder %s23, 0
    %p160 = por %p158, %p159
    %p161 = scmp.ne.s32.totalorder %s147, %s148
    %p162 = scmp.eq.s32.totalorder %s24, 7
    %p163 = por %p161, %p162
    %p165 = scmp.ne.s32.totalorder %s148, %s164
    %p166 = scmp.eq.s32.totalorder %s24, 0
    %p167 = por %p165, %p166
    %s168 = ssub.s32 %s26, %s33
    %p169 = scmp.eq.s32.totalorder %s168, 0
    %s171 = sadd.s32 %s170, 1
    %s172 = scalar_select %p169, %s170, %s171
    %p175 = pneg %p169
    %p176 = scmp.eq.s32.totalorder %s18, 7
    %p177 = por %p175, %p176
    %p178 = scmp.ne.s32.totalorder %s170, %s173
    %p179 = scmp.eq.s32.totalorder %s18, 0
    %p180 = por %p178, %p179
    %p181 = scmp.ne.s32.totalorder %s170, %s173
    %p182 = scmp.eq.s32.totalorder %s23, 7
    %p183 = por %p181, %p182
    %p184 = scmp.ne.s32.totalorder %s173, %s174
    %p185 = scmp.eq.s32.totalorder %s23, 0
    %p186 = por %p184, %p185
    %p187 = scmp.ne.s32.totalorder %s173, %s174
    %p188 = scmp.eq.s32.totalorder %s24, 7
    %p189 = por %p187, %p188
    %p191 = scmp.ne.s32.totalorder %s174, %s190
    %p192 = scmp.eq.s32.totalorder %s24, 0
    %p193 = por %p191, %p192
    %s194 = ssub.s32 %s26, %s33
    %p195 = scmp.eq.s32.totalorder %s194, 0
    %s197 = sadd.s32 %s196, 1
    %s198 = scalar_select %p195, %s196, %s197
    %p201 = pneg %p195
    %p202 = scmp.eq.s32.totalorder %s18, 7
    %p203 = por %p201, %p202
    %p204 = scmp.ne.s32.totalorder %s196, %s199
    %p205 = scmp.eq.s32.totalorder %s18, 0
    %p206 = por %p204, %p205
    %p207 = scmp.ne.s32.totalorder %s196, %s199
    %p208 = scmp.eq.s32.totalorder %s23, 7
    %p209 = por %p207, %p208
    %p210 = scmp.ne.s32.totalorder %s199, %s200
    %p211 = scmp.eq.s32.totalorder %s23, 0
    %p212 = por %p210, %p211
    %p213 = scmp.ne.s32.totalorder %s199, %s200
    %p214 = scmp.eq.s32.totalorder %s24, 7
    %p215 = por %p213, %p214
    %p217 = scmp.ne.s32.totalorder %s200, %s216
    %p218 = scmp.eq.s32.totalorder %s24, 0
    %p219 = por %p217, %p218
    %s220 = ssub.s32 %s26, %s33
    %p221 = scmp.eq.s32.totalorder %s220, 0
    %s223 = sadd.s32 %s222, 1
    %s224 = scalar_select %p221, %s222, %s223
    %p227 = pneg %p221
    %p228 = scmp.eq.s32.totalorder %s18, 7
    %p229 = por %p227, %p228
    %p230 = scmp.ne.s32.totalorder %s222, %s225
    %p231 = scmp.eq.s32.totalorder %s18, 0
    %p232 = por %p230, %p231
    %p233 = scmp.ne.s32.totalorder %s222, %s225
    %p234 = scmp.eq.s32.totalorder %s23, 7
    %p235 = por %p233, %p234
    %p236 = scmp.ne.s32.totalorder %s225, %s226
    %p237 = scmp.eq.s32.totalorder %s23, 0
    %p238 = por %p236, %p237
    %p239 = scmp.ne.s32.totalorder %s225, %s226
    %p240 = scmp.eq.s32.totalorder %s24, 7
    %p241 = por %p239, %p240
    %p243 = scmp.ne.s32.totalorder %s226, %s242
    %p244 = scmp.eq.s32.totalorder %s24, 0
    %p245 = por %p243, %p244
    %s246 = ssub.s32 %s26, %s33
    %p247 = scmp.eq.s32.totalorder %s246, 0
    %s249 = sadd.s32 %s248, 1
    %s250 = scalar_select %p247, %s248, %s249
    %p253 = pneg %p247
    %p254 = scmp.eq.s32.totalorder %s18, 7
    %p255 = por %p253, %p254
    %p256 = scmp.ne.s32.totalorder %s248, %s251
    %p257 = scmp.eq.s32.totalorder %s18, 0
    %p258 = por %p256, %p257
    %p259 = scmp.ne.s32.totalorder %s248, %s251
    %p260 = scmp.eq.s32.totalorder %s23, 7
    %p261 = por %p259, %p260
    %p262 = scmp.ne.s32.totalorder %s251, %s252
    %p263 = scmp.eq.s32.totalorder %s23, 0
    %p264 = por %p262, %p263
    %p265 = scmp.ne.s32.totalorder %s251, %s252
    %p266 = scmp.eq.s32.totalorder %s24, 7
    %p267 = por %p265, %p266
    %p269 = scmp.ne.s32.totalorder %s252, %s268
    %p270 = scmp.eq.s32.totalorder %s24, 0
    %p271 = por %p269, %p270
    %s273 = sadd.s32 %s272, 1
    %p276 = scmp.eq.s32.totalorder %s18, 7
    %p277 = scmp.ne.s32.totalorder %s272, %s274
    %p278 = scmp.eq.s32.totalorder %s18, 0
    %p279 = por %p277, %p278
    %p280 = scmp.ne.s32.totalorder %s272, %s274
    %p281 = scmp.eq.s32.totalorder %s23, 7
    %p282 = por %p280, %p281
    %p283 = scmp.ne.s32.totalorder %s274, %s275
    %p284 = scmp.eq.s32.totalorder %s23, 0
    %p285 = por %p283, %p284
    %p286 = scmp.ne.s32.totalorder %s274, %s275
    %p287 = scmp.eq.s32.totalorder %s24, 7
    %p288 = por %p286, %p287
    %p290 = scmp.ne.s32.totalorder %s275, %s289
    %p291 = scmp.eq.s32.totalorder %s24, 0
    %p292 = por %p290, %p291
    %s294 = sadd.s32 %s293, 1
    %p297 = scmp.eq.s32.totalorder %s18, 7
    %p298 = scmp.ne.s32.totalorder %s293, %s295
    %p299 = scmp.eq.s32.totalorder %s18, 0
    %p300 = por %p298, %p299
    %p301 = scmp.ne.s32.totalorder %s293, %s295
    %p302 = scmp.eq.s32.totalorder %s23, 7
    %p303 = por %p301, %p302
    %p304 = scmp.ne.s32.totalorder %s295, %s296
    %p305 = scmp.eq.s32.totalorder %s23, 0
    %p306 = por %p304, %p305
    %p307 = scmp.ne.s32.totalorder %s295, %s296
    %p308 = scmp.eq.s32.totalorder %s24, 7
    %p309 = por %p307, %p308
    %p311 = scmp.ne.s32.totalorder %s296, %s310
    %p312 = scmp.eq.s32.totalorder %s24, 0
    %p313 = por %p311, %p312
    %s315 = sadd.s32 %s314, 1
    %p318 = scmp.eq.s32.totalorder %s18, 7
    %p319 = scmp.ne.s32.totalorder %s314, %s316
    %p320 = scmp.eq.s32.totalorder %s18, 0
    %p321 = por %p319, %p320
    %p322 = scmp.ne.s32.totalorder %s314, %s316
    %p323 = scmp.eq.s32.totalorder %s23, 7
    %p324 = por %p322, %p323
    %p325 = scmp.ne.s32.totalorder %s316, %s317
    %p326 = scmp.eq.s32.totalorder %s23, 0
    %p327 = por %p325, %p326
    %p328 = scmp.ne.s32.totalorder %s316, %s317
    %p329 = scmp.eq.s32.totalorder %s24, 7
    %p330 = por %p328, %p329
    %p332 = scmp.ne.s32.totalorder %s317, %s331
    %p333 = scmp.eq.s32.totalorder %s24, 0
    %p334 = por %p332, %p333
    %s335 = ssub.s32 %s25, %s37
    %p336 = scmp.eq.s32.totalorder %s335, 0
    %s338 = sadd.s32 %s337, 1
    %s339 = scalar_select %p336, %s337, %s338
    %p342 = pneg %p336
    %p343 = scmp.eq.s32.totalorder %s18, 7
    %p344 = por %p342, %p343
    %p345 = scmp.ne.s32.totalorder %s337, %s340
    %p346 = scmp.eq.s32.totalorder %s18, 0
    %p347 = por %p345, %p346
    %p348 = scmp.ne.s32.totalorder %s337, %s340
    %p349 = scmp.eq.s32.totalorder %s23, 7
    %p350 = por %p348, %p349
    %p351 = scmp.ne.s32.totalorder %s340, %s341
    %p352 = scmp.eq.s32.totalorder %s23, 0
    %p353 = por %p351, %p352
    %p354 = scmp.ne.s32.totalorder %s340, %s341
    %p355 = scmp.eq.s32.totalorder %s24, 7
    %p356 = por %p354, %p355
    %p358 = scmp.ne.s32.totalorder %s341, %s357
    %p359 = scmp.eq.s32.totalorder %s24, 0
    %p360 = por %p358, %p359
    %p361 = scmp.le.s32.totalorder 1, %s18
    %p362 = scmp.lt.s32.totalorder %s18, 9
    %p363 = pnand %p361, %p362
    %p364 = pneg %p363
    // Predicated region
    $region9: #{bayesformer_forward.7} parent=5 // pred_check
      _
    $region10: #{bayesformer_forward.7} parent=5 // pred_check_branch
      %366 = sbr.rel (%p363) target = $region12
    $region11: #{bayesformer_forward.7} parent=5 // pred_region
      %s367 = ssub.s32 %s18, 1
      // Predicated region
      $region13: #{bayesformer_forward.7} parent=11 // pred_check
        %p368 = pneg %p285
      $region14: #{bayesformer_forward.7} parent=11 // pred_check_branch
        %370 = sbr.rel (%p368) target = $region16
      $region15: #{bayesformer_forward.7} parent=11 // pred_region
        _
      $region16: #{bayesformer_forward.7} parent=11 // pred_fallthru
        _
      // Predicated region
      $region17: #{bayesformer_forward.7} parent=11 // pred_check
        %p371 = pneg %p306
      $region18: #{bayesformer_forward.7} parent=11 // pred_check_branch
        %373 = sbr.rel (%p371) target = $region20
      $region19: #{bayesformer_forward.7} parent=11 // pred_region
        _
      $region20: #{bayesformer_forward.7} parent=11 // pred_fallthru
        _
      // Predicated region
      $region21: #{bayesformer_forward.7} parent=11 // pred_check
        %p374 = pneg %p327
      $region22: #{bayesformer_forward.7} parent=11 // pred_check_branch
        %376 = sbr.rel (%p374) target = $region24
      $region23: #{bayesformer_forward.7} parent=11 // pred_region
        _
      $region24: #{bayesformer_forward.7} parent=11 // pred_fallthru
        _
    $region12: #{bayesformer_forward.7} parent=5 // pred_fallthru
      _
    %p377 = scmp.lt.s32.totalorder %s18, 8
    // Predicated region
    $region25: #{bayesformer_forward.7} parent=5 // pred_check
      %p378 = pneg %p377
    $region26: #{bayesformer_forward.7} parent=5 // pred_check_branch
      %380 = sbr.rel (%p378) target = $region28
    $region27: #{bayesformer_forward.7} parent=5 // pred_region
      // Predicated region
      $region29: #{bayesformer_forward.7} parent=27 // pred_check
        %p381 = pneg %p50
      $region30: #{bayesformer_forward.7} parent=27 // pred_check_branch
        %383 = sbr.rel (%p381) target = $region32
      $region31: #{bayesformer_forward.7} parent=27 // pred_region
        %p384 = scmp.lt.s32.totalorder %s25, 1
        %s385 = scalar_select %p384, %s25, 1
        %s386 = smul.addr %s385, 4
        %s387 = scalar_lea.vmem %s0, %s386
      $region32: #{bayesformer_forward.7} parent=27 // pred_fallthru
        _
      // Predicated region
      $region33: #{bayesformer_forward.7} parent=27 // pred_check
        %p388 = pneg %p76
      $region34: #{bayesformer_forward.7} parent=27 // pred_check_branch
        %390 = sbr.rel (%p388) target = $region36
      $region35: #{bayesformer_forward.7} parent=27 // pred_region
        %p391 = scmp.lt.s32.totalorder %s25, 1
        %s392 = scalar_select %p391, %s25, 1
        %s393 = smul.addr %s392, 4
        %s394 = scalar_lea.vmem %s1, %s393
      $region36: #{bayesformer_forward.7} parent=27 // pred_fallthru
        _
      // Predicated region
      $region37: #{bayesformer_forward.7} parent=27 // pred_check
        %p395 = pneg %p102
      $region38: #{bayesformer_forward.7} parent=27 // pred_check_branch
        %397 = sbr.rel (%p395) target = $region40
      $region39: #{bayesformer_forward.7} parent=27 // pred_region
        %p398 = scmp.lt.s32.totalorder %s26, 3
        %s399 = scalar_select %p398, %s26, 3
        %s400 = smul.addr %s399, 4
        %s401 = smul.addr %s400, 4
        %s402 = scalar_lea.vmem %s2, %s401
      $region40: #{bayesformer_forward.7} parent=27 // pred_fallthru
        _
      // Predicated region
      $region41: #{bayesformer_forward.7} parent=27 // pred_check
        %p403 = pneg %p128
      $region42: #{bayesformer_forward.7} parent=27 // pred_check_branch
        %405 = sbr.rel (%p403) target = $region44
      $region43: #{bayesformer_forward.7} parent=27 // pred_region
        %p406 = scmp.lt.s32.totalorder %s26, 3
        %s407 = scalar_select %p406, %s26, 3
        %s408 = scalar_lea.vmem %s3, %s407
      $region44: #{bayesformer_forward.7} parent=27 // pred_fallthru
        _
      // Predicated region
      $region45: #{bayesformer_forward.7} parent=27 // pred_check
        %p409 = pneg %p154
      $region46: #{bayesformer_forward.7} parent=27 // pred_check_branch
        %411 = sbr.rel (%p409) target = $region48
      $region47: #{bayesformer_forward.7} parent=27 // pred_region
        %p412 = scmp.lt.s32.totalorder %s26, 3
        %s413 = scalar_select %p412, %s26, 3
        %s414 = smul.addr %s413, 4
        %s415 = smul.addr %s414, 4
        %s416 = scalar_lea.vmem %s4, %s415
      $region48: #{bayesformer_forward.7} parent=27 // pred_fallthru
        _
      // Predicated region
      $region49: #{bayesformer_forward.7} parent=27 // pred_check
        %p417 = pneg %p180
      $region50: #{bayesformer_forward.7} parent=27 // pred_check_branch
        %419 = sbr.rel (%p417) target = $region52
      $region51: #{bayesformer_forward.7} parent=27 // pred_region
        %p420 = scmp.lt.s32.totalorder %s26, 3
        %s421 = scalar_select %p420, %s26, 3
        %s422 = scalar_lea.vmem %s5, %s421
      $region52: #{bayesformer_forward.7} parent=27 // pred_fallthru
        _
      // Predicated region
      $region53: #{bayesformer_forward.7} parent=27 // pred_check
        %p423 = pneg %p206
      $region54: #{bayesformer_forward.7} parent=27 // pred_check_branch
        %425 = sbr.rel (%p423) target = $region56
      $region55: #{bayesformer_forward.7} parent=27 // pred_region
        %p426 = scmp.lt.s32.totalorder %s26, 3
        %s427 = scalar_select %p426, %s26, 3
        %s428 = smul.addr %s427, 4
        %s429 = smul.addr %s428, 4
        %s430 = scalar_lea.vmem %s6, %s429
      $region56: #{bayesformer_forward.7} parent=27 // pred_fallthru
        _
      // Predicated region
      $region57: #{bayesformer_forward.7} parent=27 // pred_check
        %p431 = pneg %p232
      $region58: #{bayesformer_forward.7} parent=27 // pred_check_branch
        %433 = sbr.rel (%p431) target = $region60
      $region59: #{bayesformer_forward.7} parent=27 // pred_region
        %p434 = scmp.lt.s32.totalorder %s26, 3
        %s435 = scalar_select %p434, %s26, 3
        %s436 = scalar_lea.vmem %s7, %s435
      $region60: #{bayesformer_forward.7} parent=27 // pred_fallthru
        _
      // Predicated region
      $region61: #{bayesformer_forward.7} parent=27 // pred_check
        %p437 = pneg %p258
      $region62: #{bayesformer_forward.7} parent=27 // pred_check_branch
        %439 = sbr.rel (%p437) target = $region64
      $region63: #{bayesformer_forward.7} parent=27 // pred_region
        %p440 = scmp.lt.s32.totalorder %s26, 3
        %s441 = scalar_select %p440, %s26, 3
        %s442 = smul.addr %s441, 4
        %s443 = scalar_lea.vmem %s8, %s442
      $region64: #{bayesformer_forward.7} parent=27 // pred_fallthru
        _
    $region28: #{bayesformer_forward.7} parent=5 // pred_fallthru
      _
    %p444 = scmp.le.s32.totalorder 1, %s18
    %p445 = scmp.lt.s32.totalorder %s18, 9
    %p446 = pnand %p444, %p445
    %p447 = pneg %p446
    // Predicated region
    $region65: #{bayesformer_forward.7} parent=5 // pred_check
      _
    $region66: #{bayesformer_forward.7} parent=5 // pred_check_branch
      %449 = sbr.rel (%p446) target = $region68
    $region67: #{bayesformer_forward.7} parent=5 // pred_region
      %s450 = ssub.s32 %s18, 1
      %p451 = scmp.lt.s32.totalorder %s27, 1
      %s452 = scalar_select %p451, %s27, 1
      %s453 = smul.addr %s452, 4
      %s454 = scalar_lea.vmem %s0, %s453
      %p455 = pneg %p56
      %p456 = pneg %p53
      %p457 = scmp.lt.s32.totalorder %s27, 1
      %s458 = scalar_select %p457, %s27, 1
      %s459 = smul.addr %s458, 4
      %s460 = scalar_lea.vmem %s1, %s459
      %p461 = pneg %p82
      %p462 = pneg %p79
      %p463 = scmp.lt.s32.totalorder %s28, 3
      %s464 = scalar_select %p463, %s28, 3
      %s465 = smul.addr %s464, 4
      %s466 = smul.addr %s465, 4
      %s467 = scalar_lea.vmem %s2, %s466
      %p468 = pneg %p108
      %p469 = pneg %p105
      %p470 = scmp.lt.s32.totalorder %s28, 3
      %s471 = scalar_select %p470, %s28, 3
      %s472 = scalar_lea.vmem %s3, %s471
      %p473 = pneg %p134
      %p474 = pneg %p131
      %p475 = scmp.lt.s32.totalorder %s28, 3
      %s476 = scalar_select %p475, %s28, 3
      %s477 = smul.addr %s476, 4
      %s478 = smul.addr %s477, 4
      %s479 = scalar_lea.vmem %s4, %s478
      %p480 = pneg %p160
      %p481 = pneg %p157
      %p482 = scmp.lt.s32.totalorder %s28, 3
      %s483 = scalar_select %p482, %s28, 3
      %s484 = scalar_lea.vmem %s5, %s483
      %p485 = pneg %p186
      %p486 = pneg %p183
      %p487 = scmp.lt.s32.totalorder %s28, 3
      %s488 = scalar_select %p487, %s28, 3
      %s489 = smul.addr %s488, 4
      %s490 = smul.addr %s489, 4
      %s491 = scalar_lea.vmem %s6, %s490
      %p492 = pneg %p212
      %p493 = pneg %p209
      %p494 = scmp.lt.s32.totalorder %s28, 3
      %s495 = scalar_select %p494, %s28, 3
      %s496 = scalar_lea.vmem %s7, %s495
      %p497 = pneg %p238
      %p498 = pneg %p235
      %p499 = scmp.lt.s32.totalorder %s28, 3
      %s500 = scalar_select %p499, %s28, 3
      %s501 = smul.addr %s500, 4
      %s502 = scalar_lea.vmem %s8, %s501
      %p503 = pneg %p264
      %p504 = pneg %p261
      %p505 = pneg %p285
      %p506 = pneg %p282
      %p507 = pneg %p306
      %p508 = pneg %p303
      %p509 = pneg %p327
      %p510 = pneg %p324
      %p511 = pneg %p353
      %p512 = pneg %p350
      %p513 = scmp.lt.s32.totalorder %s27, 1
      %s514 = scalar_select %p513, %s27, 1
      %s515 = smul.addr %s514, 4
      %s516 = scalar_lea.vmem %s12, %s515
      %p517 = scmp.lt.s32.totalorder %s27, 1
      %s518 = scalar_select %p517, %s27, 1
      %s519 = smul.addr %s518, 4
      %s520 = scalar_lea.vmem %s0, %s519
      %p521 = scmp.lt.s32.totalorder %s27, 1
      %s522 = scalar_select %p521, %s27, 1
      %s523 = smul.addr %s522, 4
      %s524 = scalar_lea.vmem %s1, %s523
      %p525 = scmp.lt.s32.totalorder %s28, 3
      %s526 = scalar_select %p525, %s28, 3
      %s527 = smul.addr %s526, 4
      %s528 = smul.addr %s527, 4
      %s529 = scalar_lea.vmem %s2, %s528
      %p530 = scmp.lt.s32.totalorder %s28, 3
      %s531 = scalar_select %p530, %s28, 3
      %s532 = scalar_lea.vmem %s3, %s531
      %p533 = scmp.lt.s32.totalorder %s28, 3
      %s534 = scalar_select %p533, %s28, 3
      %s535 = smul.addr %s534, 4
      %s536 = smul.addr %s535, 4
      %s537 = scalar_lea.vmem %s4, %s536
      %p538 = scmp.lt.s32.totalorder %s28, 3
      %s539 = scalar_select %p538, %s28, 3
      %s540 = scalar_lea.vmem %s5, %s539
      %p541 = scmp.lt.s32.totalorder %s28, 3
      %s542 = scalar_select %p541, %s28, 3
      %s543 = smul.addr %s542, 4
      %s544 = smul.addr %s543, 4
      %s545 = scalar_lea.vmem %s6, %s544
      %p546 = scmp.lt.s32.totalorder %s28, 3
      %s547 = scalar_select %p546, %s28, 3
      %s548 = scalar_lea.vmem %s7, %s547
      %p549 = scmp.lt.s32.totalorder %s28, 3
      %s550 = scalar_select %p549, %s28, 3
      %s551 = smul.addr %s550, 4
      %s552 = scalar_lea.vmem %s8, %s551
      %p553 = scmp.lt.s32.totalorder %s27, 1
      %s554 = scalar_select %p553, %s27, 1
      %s555 = smul.addr %s554, 4
      %s556 = scalar_lea.vmem %s12, %s555
      %p558 = scmp.eq.s32.totalorder %s28, 0
      // Predicated region
      $region69: #{bayesformer_forward.7} parent=67 // pred_check
        %p559 = pneg %p558
      $region70: #{bayesformer_forward.7} parent=67 // pred_check_branch
        %561 = sbr.rel (%p559) target = $region72
      $region71: #{bayesformer_forward.7} parent=67 // pred_region
        %vm562 = vcmask 261120
        %563 = vst.msk [vmem:[#allocation2] sm:$0xff] %vm562, 0.0
      $region72: #{bayesformer_forward.7} parent=67 // pred_fallthru
        _
      %v564 = vld [vmem:[%s520] sm:$0xf]
      %v565 = vld [vmem:[%s524] sm:$0xf]
      %v566 = vld [vmem:[%s529] sm:$0xf]
      %v567 = vld [vmem:[%s529 + $0x4] sm:$0xf]
      %v568 = vld [vmem:[%s529 + $0x8] sm:$0xf]
      %v569 = vld [vmem:[%s529 + $0xc] sm:$0xf]
      %v570 = vld [vmem:[%s532] sm:$0x1]
      %v572 = vperm.slane %v570, 0
      %v578 = vunpack.c.l.b16 %v566
      %v579 = vunpack.c.l.b16 %v567
      %v580 = vunpack.c.l.b16 %v568
      %v581 = vunpack.c.l.b16 %v569
      %v582 = vpack.c.b16 %v579, %v578
      %v583 = vpack.c.b16 %v581, %v580
      %vm586 = vcmask 261120
      %v588 = vsel %vm586, %v564, 0
      %590 = vmatpush.bf16.msra.mxu0 0
      %591 = vmatpush.bf16.msra.mxu0 0
      %592 = vmatpush.bf16.msra.mxu0 0
      %593 = vmatpush.bf16.msra.mxu0 0
      %594 = vmatpush.bf16.msra.mxu0 0
      %595 = vmatpush.bf16.msra.mxu0 0
      %596 = vmatpush.bf16.msra.mxu0 %v583
      %597 = vmatpush.bf16.msra.mxu0 %v582
      %598 = vmatmul.bf16.gmra.mxu0 %v588
      %v599 = vpop.f32.mrf.mxu0
      %v600 = vadd.f32 %v572, %v599
      %v601 = vpop.f32.mrf.mxu0
      %602 = vdwg.mxu0
      %v603 = vpack.c.bf16 %v600, %v600
      %v604 = vld [vmem:[%s537] sm:$0xf]
      %v605 = vld [vmem:[%s537 + $0x4] sm:$0xf]
      %v606 = vld [vmem:[%s537 + $0x8] sm:$0xf]
      %v607 = vld [vmem:[%s537 + $0xc] sm:$0xf]
      %v608 = vld [vmem:[%s540] sm:$0x1]
      %v610 = vperm.slane %v608, 0
      %v616 = vunpack.c.l.b16 %v604
      %v617 = vunpack.c.l.b16 %v605
      %v618 = vunpack.c.l.b16 %v606
      %v619 = vunpack.c.l.b16 %v607
      %v620 = vpack.c.b16 %v617, %v616
      %v621 = vpack.c.b16 %v619, %v618
      %v625 = vsel %vm586, %v565, 0
      %627 = vmatpush.bf16.msra.mxu0 0
      %628 = vmatpush.bf16.msra.mxu0 0
      %629 = vmatpush.bf16.msra.mxu0 0
      %630 = vmatpush.bf16.msra.mxu0 0
      %631 = vmatpush.bf16.msra.mxu0 0
      %632 = vmatpush.bf16.msra.mxu0 0
      %633 = vmatpush.bf16.msra.mxu0 %v621
      %634 = vmatpush.bf16.msra.mxu0 %v620
      %635 = vmatmul.bf16.gmra.mxu0 %v625
      %v636 = vpop.f32.mrf.mxu0
      %v637 = vadd.f32 %v610, %v636
      %v638 = vpop.f32.mrf.mxu0
      %639 = vdwg.mxu0
      %v640 = vpack.c.bf16 %v637, %v637
      %v641 = vld [vmem:[%s545] sm:$0xf]
      %v642 = vld [vmem:[%s545 + $0x4] sm:$0xf]
      %v643 = vld [vmem:[%s545 + $0x8] sm:$0xf]
      %v644 = vld [vmem:[%s545 + $0xc] sm:$0xf]
      %v645 = vld [vmem:[%s548] sm:$0x1]
      %v647 = vperm.slane %v645, 0
      %v653 = vunpack.c.l.b16 %v641
      %v654 = vunpack.c.l.b16 %v642
      %v655 = vunpack.c.l.b16 %v643
      %v656 = vunpack.c.l.b16 %v644
      %v657 = vpack.c.b16 %v654, %v653
      %v658 = vpack.c.b16 %v656, %v655
      %661 = vmatpush.bf16.msra.mxu0 0
      %662 = vmatpush.bf16.msra.mxu0 0
      %663 = vmatpush.bf16.msra.mxu0 0
      %664 = vmatpush.bf16.msra.mxu0 0
      %665 = vmatpush.bf16.msra.mxu0 0
      %666 = vmatpush.bf16.msra.mxu0 0
      %667 = vmatpush.bf16.msra.mxu0 %v658
      %668 = vmatpush.bf16.msra.mxu0 %v657
      %669 = vmatmul.bf16.gmra.mxu0 %v625
      %v670 = vpop.f32.mrf.mxu0
      %v671 = vadd.f32 %v647, %v670
      %v672 = vpop.f32.mrf.mxu0
      %673 = vdwg.mxu0
      %v674 = vpack.c.bf16 %v671, %v671
      %vm675 = vcmask 64512
      %v677 = vsel %vm675, %v603, 0
      %v680 = vsel %vm675, %v640, 0
      %682 = vmatpush.bf16.xpose.msra.mxu0 0
      %683 = vmatpush.bf16.xpose.msra.mxu0 0
      %684 = vmatpush.bf16.xpose.msra.mxu0 0
      %685 = vmatpush.bf16.xpose.msra.mxu0 0
      %686 = vmatpush.bf16.xpose.msra.mxu0 0
      %687 = vmatpush.bf16.xpose.msra.mxu0 0
      %688 = vmatpush.bf16.xpose.msra.mxu0 0
      %689 = vmatpush.bf16.xpose.msra.mxu0 %v680
      %690 = vmatmul.bf16.gmra.mxu0 %v677
      %v691 = vpop.f32.mrf.mxu0
      %v692 = vadd.f32 0.0, %v691
      %v693 = vpop.f32.mrf.mxu0
      %694 = vdwg.mxu0
      %v695 = vsel %vm675, %v692, -inf
      %696 = vmax.xlane.f32.xlu0 %v695
      %v697 = vpop.xlane.xlu0 %696
      %v698 = vsub.f32 %v692, %v697
      %v699 = vmul.f32 %v698, 1.442695
      %v700 = vpow.pop %v699
      %v701 = vsel %vm675, %v700, 0.0
      %702 = vadd.xlane.f32.xlu0 %v701
      %v703 = vpop.xlane.xlu0 %702
      %v704 = vrcp.pop %v703
      %v705 = vpack.c.bf16 %v700, %v700
      %v707 = vsel %vm675, %v705, 0
      %vm709 = vcmask 1043456
      %v711 = vsel %vm709, %v674, 0
      %713 = vmatpush.bf16.msra.mxu0 0
      %714 = vmatpush.bf16.msra.mxu0 0
      %715 = vmatpush.bf16.msra.mxu0 0
      %716 = vmatpush.bf16.msra.mxu0 0
      %717 = vmatpush.bf16.msra.mxu0 0
      %718 = vmatpush.bf16.msra.mxu0 0
      %719 = vmatpush.bf16.msra.mxu0 0
      %720 = vmatpush.bf16.msra.mxu0 %v711
      %721 = vmatmul.bf16.gmra.mxu0 %v707
      %v722 = vpop.f32.mrf.mxu0
      %v723 = vadd.f32 0.0, %v722
      %v724 = vpop.f32.mrf.mxu0
      %725 = vdwg.mxu0
      %v726 = vmul.f32 %v723, %v704
      %v727 = vpack.c.bf16 %v726, %v726
      %v728 = vld [vmem:[#allocation2] sm:$0xff]
      %v729 = vld [vmem:[%s552] sm:$0xf]
      %v731 = vsel %vm675, %v727, 0
      %v734 = vsel %vm709, %v729, 0
      %736 = vmatpush.bf16.msra.mxu0 0
      %737 = vmatpush.bf16.msra.mxu0 0
      %738 = vmatpush.bf16.msra.mxu0 0
      %739 = vmatpush.bf16.msra.mxu0 0
      %740 = vmatpush.bf16.msra.mxu0 0
      %741 = vmatpush.bf16.msra.mxu0 0
      %742 = vmatpush.bf16.msra.mxu0 0
      %743 = vmatpush.bf16.msra.mxu0 %v734
      %744 = vmatmul.bf16.gmra.mxu0 %v731
      %v745 = vpop.f32.mrf.mxu0
      %v746 = vadd.f32 0.0, %v745
      %v747 = vpop.f32.mrf.mxu0
      %748 = vdwg.mxu0
      %v749 = vadd.f32 %v728, %v746
      %750 = vst.msk [vmem:[#allocation2] sm:$0xff] %vm586, %v749
      %p751 = scmp.eq.s32.totalorder %s28, 3
      // Predicated region
      $region73: #{bayesformer_forward.7} parent=67 // pred_check
        %p752 = pneg %p751
      $region74: #{bayesformer_forward.7} parent=67 // pred_check_branch
        %754 = sbr.rel (%p752) target = $region76
      $region75: #{bayesformer_forward.7} parent=67 // pred_region
        %v755 = vld [vmem:[#allocation2] sm:$0xff]
        %v756 = vld [vmem:[%s9] sm:$0x1]
        %v758 = vperm.slane %v756, 0
        %v760 = vadd.f32 %v755, %v758
        %v761 = vunpack.c.l.bf16 %v564
        %v762 = vadd.f32 %v760, %v761
        %v763 = vld [vmem:[%s10] sm:$0x1]
        %v764 = vld [vmem:[%s11] sm:$0x1]
        %v765 = vsel %vm586, %v762, 0.0
        %766 = vadd.xlane.f32.xlu0 %v765
        %v767 = vpop.xlane.xlu0 %766
        %v768 = vrcp.pop 32.0
        %v769 = vmul.f32 32.0, %v768
        %v770 = vsub.f32 1.0, %v769
        %v771 = vmul.f32 %v768, %v770
        %v772 = vadd.f32 %v768, %v771
        %vm773 = vweird.f32 %v768
        %v774 = vsel %vm773, %v768, %v772
        %v775 = vmul.f32 %v767, %v774
        %v776 = vsub.f32 %v762, %v775
        %v777 = vmul.f32 %v776, %v776
        %v778 = vsel %vm586, %v777, 0.0
        %779 = vadd.xlane.f32.xlu0 %v778
        %v780 = vpop.xlane.xlu0 %779
        %v781 = vmul.f32 %v780, %v774
        %v782 = vadd.f32 %v781, 1e-05
        %v783 = vrsqrt.pop %v782
        %v784 = vmul.f32 %v783, %v782
        %v785 = vmul.f32 %v784, %v783
        %v786 = vmul.f32 0.5, %v785
        %v787 = vsub.f32 1.5, %v786
        %v788 = vmul.f32 %v783, %v787
        %vm789 = vweird.f32 %v782
        %vm790 = vweird.f32 %v783
        %vm791 = vmor %vm789, %vm790
        %v792 = vsel %vm791, %v783, %v788
        %v793 = vmul.f32 %v776, %v792
        %v795 = vperm.slane %v763, 0
        %v797 = vmul.f32 %v793, %v795
        %v799 = vperm.slane %v764, 0
        %v801 = vadd.f32 %v797, %v799
        %v802 = vpack.c.bf16 %v801, %v801
        %vm803 = vcmask 257024
        %804 = vst.msk [vmem:[%s556] sm:$0xf] %vm803, %v802
      $region76: #{bayesformer_forward.7} parent=67 // pred_fallthru
        _
      %p805 = scmp.lt.s32.totalorder %s27, 1
      %s806 = scalar_select %p805, %s27, 1
      %s807 = smul.addr %s806, 4
      %s808 = scalar_lea.vmem %s12, %s807
      // Predicated region
      $region77: #{bayesformer_forward.7} parent=67 // pred_check
        %p809 = pneg %p350
      $region78: #{bayesformer_forward.7} parent=67 // pred_check_branch
        %811 = sbr.rel (%p809) target = $region80
      $region79: #{bayesformer_forward.7} parent=67 // pred_region
        _
      $region80: #{bayesformer_forward.7} parent=67 // pred_fallthru
        _
    $region68: #{bayesformer_forward.7} parent=5 // pred_fallthru
      _
    %p812 = scmp.le.s32.totalorder 2, %s18
    // Predicated region
    $region81: #{bayesformer_forward.7} parent=5 // pred_check
      %p813 = pneg %p812
    $region82: #{bayesformer_forward.7} parent=5 // pred_check_branch
      %815 = sbr.rel (%p813) target = $region84
    $region83: #{bayesformer_forward.7} parent=5 // pred_region
      %s816 = ssub.s32 %s18, 2
      // Predicated region
      $region85: #{bayesformer_forward.7} parent=83 // pred_check
        %p817 = pneg %p356
      $region86: #{bayesformer_forward.7} parent=83 // pred_check_branch
        %819 = sbr.rel (%p817) target = $region88
      $region87: #{bayesformer_forward.7} parent=83 // pred_region
        %p820 = scmp.lt.s32.totalorder %s29, 1
        %s821 = scalar_select %p820, %s29, 1
        %s822 = smul.addr %s821, 4
        %s823 = scalar_lea.vmem %s12, %s822
      $region88: #{bayesformer_forward.7} parent=83 // pred_fallthru
        _
    $region84: #{bayesformer_forward.7} parent=5 // pred_fallthru
      _
  $region6: #{bayesformer_forward.7} parent=0 // loop_footer
    %s22 = sadd.s32 1, %s18
  $region7: #{bayesformer_forward.7} parent=0 // loop_footer_branch
    %17 = sbr.rel target = $region3
  $region8: #{bayesformer_forward.7} parent=0 // loop_exit
    _

// kernel: bayesformer_forward.8
$region0: #{bayesformer_forward.8}
  #allocation0 [shape = 'u32[]', space=smem, size = 0x4, offset = 0x4, fixed_abs, tag = 'smem constant byte address 0x4 - core index']
  #allocation1 [shape = 'u32[72,128]{1,0:T(1,128)}', space=vmem, size = 0x9000, scoped, tag = 'internal scratch']
  %s0 = inlined_call_operand.vmem [shape: bf16[16,32], index: 0, kind: input, shape index: {}]
  %s1 = inlined_call_operand.vmem [shape: bf16[32,64], index: 1, kind: input, shape index: {}]
  %s2 = inlined_call_operand.vmem [shape: f32[1,64], index: 2, kind: input, shape index: {}]
  %s3 = inlined_call_operand.vmem [shape: bf16[64,32], index: 3, kind: input, shape index: {}]
  %s4 = inlined_call_operand.vmem [shape: f32[1,32], index: 4, kind: input, shape index: {}]
  %s5 = inlined_call_operand.vmem [shape: f32[1,32], index: 5, kind: input, shape index: {}]
  %s6 = inlined_call_operand.vmem [shape: f32[1,32], index: 6, kind: input, shape index: {}]
  %s7 = inlined_call_operand.vmem [shape: bf16[16,32], index: 7, kind: output, shape index: {}]
  %s8 = sld [smem:[#allocation0]]
  $region38: #{bayesformer_forward.8} parent=0
    _
  %s10 = ssub.s32 1, %s8
  %s11 = scalar_select 0, %s10, %s8
  // Predicated region
  $region2: #{bayesformer_forward.8} parent=0 // pred_check
    _
  $region3: #{bayesformer_forward.8} parent=0 // pred_check_branch
    %13 = sbr.rel (0) target = $region5
  $region4: #{bayesformer_forward.8} parent=0 // pred_region
    _
  $region5: #{bayesformer_forward.8} parent=0 // pred_fallthru
    _
  // Predicated region
  $region6: #{bayesformer_forward.8} parent=0 // pred_check
    _
  $region7: #{bayesformer_forward.8} parent=0 // pred_check_branch
    %15 = sbr.rel (0) target = $region9
  $region8: #{bayesformer_forward.8} parent=0 // pred_region
    _
  $region9: #{bayesformer_forward.8} parent=0 // pred_fallthru
    _
  // Predicated region
  $region10: #{bayesformer_forward.8} parent=0 // pred_check
    _
  $region11: #{bayesformer_forward.8} parent=0 // pred_check_branch
    %17 = sbr.rel (0) target = $region13
  $region12: #{bayesformer_forward.8} parent=0 // pred_region
    _
  $region13: #{bayesformer_forward.8} parent=0 // pred_fallthru
    _
  // Predicated region
  $region14: #{bayesformer_forward.8} parent=0 // pred_check
    _
  $region15: #{bayesformer_forward.8} parent=0 // pred_check_branch
    %19 = sbr.rel (0) target = $region17
  $region16: #{bayesformer_forward.8} parent=0 // pred_region
    _
  $region17: #{bayesformer_forward.8} parent=0 // pred_fallthru
    _
  // Predicated region
  $region18: #{bayesformer_forward.8} parent=0 // pred_check
    _
  $region19: #{bayesformer_forward.8} parent=0 // pred_check_branch
    %21 = sbr.rel (0) target = $region21
  $region20: #{bayesformer_forward.8} parent=0 // pred_region
    _
  $region21: #{bayesformer_forward.8} parent=0 // pred_fallthru
    _
  // Predicated region
  $region22: #{bayesformer_forward.8} parent=0 // pred_check
    _
  $region23: #{bayesformer_forward.8} parent=0 // pred_check_branch
    %23 = sbr.rel (0) target = $region25
  $region24: #{bayesformer_forward.8} parent=0 // pred_region
    _
  $region25: #{bayesformer_forward.8} parent=0 // pred_fallthru
    _
  // Predicated region
  $region26: #{bayesformer_forward.8} parent=0 // pred_check
    _
  $region27: #{bayesformer_forward.8} parent=0 // pred_check_branch
    %25 = sbr.rel (0) target = $region29
  $region28: #{bayesformer_forward.8} parent=0 // pred_region
    _
  $region29: #{bayesformer_forward.8} parent=0 // pred_fallthru
    _
  %v27 = vld [vmem:[%s0] sm:$0xf]
  %v28 = vld [vmem:[%s0 + $0x4] sm:$0xf]
  %v29 = vld [vmem:[%s1] sm:$0xf]
  %v30 = vld [vmem:[%s1 + $0x4] sm:$0xf]
  %v31 = vld [vmem:[%s1 + $0x8] sm:$0xf]
  %v32 = vld [vmem:[%s1 + $0xc] sm:$0xf]
  %v33 = vld [vmem:[%s2] sm:$0x1]
  %v35 = vperm.slane %v33, 0
  %v39 = vunpack.c.l.b16 %v27
  %v40 = vunpack.c.l.b16 %v28
  %v41 = vpack.c.b16 %v40, %v39
  %v46 = vunpack.c.l.b16 %v29
  %v47 = vunpack.c.l.b16 %v30
  %v48 = vunpack.c.l.b16 %v31
  %v49 = vunpack.c.l.b16 %v32
  %v50 = vpack.c.b16 %v47, %v46
  %v51 = vpack.c.b16 %v49, %v48
  %vm54 = vcmask 261120
  %v56 = vsel %vm54, %v41, 0
  %58 = vmatpush.bf16.msra.mxu0 0
  %59 = vmatpush.bf16.msra.mxu0 0
  %60 = vmatpush.bf16.msra.mxu0 0
  %61 = vmatpush.bf16.msra.mxu0 0
  %62 = vmatpush.bf16.msra.mxu0 0
  %63 = vmatpush.bf16.msra.mxu0 0
  %64 = vmatpush.bf16.msra.mxu0 %v51
  %65 = vmatpush.bf16.msra.mxu0 %v50
  %66 = vmatmul.bf16.gmra.mxu0 %v56
  %v67 = vpop.f32.mrf.mxu0
  %v68 = vadd.f32 %v35, %v67
  %v69 = vpop.f32.mrf.mxu0
  %v70 = vadd.f32 %v35, %v69
  %71 = vdwg.mxu0
  %v72 = vmax.f32 %v68, 0.0
  %v73 = vmax.f32 %v70, 0.0
  %v74 = vpack.c.bf16 %v73, %v72
  %v75 = vld [vmem:[%s3] sm:$0xf]
  %v76 = vld [vmem:[%s3 + $0x4] sm:$0xf]
  %v77 = vld [vmem:[%s3 + $0x8] sm:$0xf]
  %v78 = vld [vmem:[%s3 + $0xc] sm:$0xf]
  %v79 = vld [vmem:[%s3 + $0x10] sm:$0xf]
  %v80 = vld [vmem:[%s3 + $0x14] sm:$0xf]
  %v81 = vld [vmem:[%s3 + $0x18] sm:$0xf]
  %v82 = vld [vmem:[%s3 + $0x1c] sm:$0xf]
  %v83 = vld [vmem:[%s4] sm:$0x1]
  %v85 = vperm.slane %v83, 0
  %v95 = vunpack.c.l.b16 %v75
  %v96 = vunpack.c.l.b16 %v76
  %v97 = vunpack.c.l.b16 %v77
  %v98 = vunpack.c.l.b16 %v78
  %v99 = vunpack.c.l.b16 %v79
  %v100 = vunpack.c.l.b16 %v80
  %v101 = vunpack.c.l.b16 %v81
  %v102 = vunpack.c.l.b16 %v82
  %v103 = vpack.c.b16 %v96, %v95
  %v104 = vpack.c.b16 %v98, %v97
  %v105 = vpack.c.b16 %v100, %v99
  %v106 = vpack.c.b16 %v102, %v101
  %vm111 = vcmask 523264
  %v113 = vsel %vm111, %v74, 0
  %115 = vmatpush.bf16.msra.mxu0 0
  %116 = vmatpush.bf16.msra.mxu0 0
  %117 = vmatpush.bf16.msra.mxu0 0
  %118 = vmatpush.bf16.msra.mxu0 0
  %119 = vmatpush.bf16.msra.mxu0 %v106
  %120 = vmatpush.bf16.msra.mxu0 %v105
  %121 = vmatpush.bf16.msra.mxu0 %v104
  %122 = vmatpush.bf16.msra.mxu0 %v103
  %123 = vmatmul.bf16.gmra.mxu0 %v113
  %v124 = vpop.f32.mrf.mxu0
  %v125 = vadd.f32 %v85, %v124
  %v126 = vpop.f32.mrf.mxu0
  %v127 = vadd.f32 %v85, %v126
  %128 = vdwg.mxu0
  %v129 = vunpack.c.l.bf16 %v27
  %v130 = vunpack.c.l.bf16 %v28
  %v131 = vadd.f32 %v125, %v129
  %v132 = vadd.f32 %v127, %v130
  %v133 = vld [vmem:[%s5] sm:$0x1]
  %v134 = vld [vmem:[%s6] sm:$0x1]
  %v135 = vsel %vm54, %v131, 0.0
  %136 = vadd.xlane.f32.xlu0 %v135
  %v137 = vpop.xlane.xlu0 %136
  %v138 = vsel %vm54, %v132, 0.0
  %139 = vadd.xlane.f32.xlu0 %v138
  %v140 = vpop.xlane.xlu0 %139
  %v141 = vrcp.pop 32.0
  %v142 = vmul.f32 32.0, %v141
  %v143 = vsub.f32 1.0, %v142
  %v144 = vmul.f32 %v141, %v143
  %v145 = vadd.f32 %v141, %v144
  %vm146 = vweird.f32 %v141
  %v147 = vsel %vm146, %v141, %v145
  %v148 = vmul.f32 %v137, %v147
  %v149 = vmul.f32 %v140, %v147
  %v150 = vsub.f32 %v131, %v148
  %v151 = vsub.f32 %v132, %v149
  %v152 = vmul.f32 %v150, %v150
  %v153 = vmul.f32 %v151, %v151
  %v154 = vsel %vm54, %v152, 0.0
  %155 = vadd.xlane.f32.xlu0 %v154
  %v156 = vpop.xlane.xlu0 %155
  %v157 = vsel %vm54, %v153, 0.0
  %158 = vadd.xlane.f32.xlu0 %v157
  %v159 = vpop.xlane.xlu0 %158
  %v160 = vmul.f32 %v156, %v147
  %v161 = vmul.f32 %v159, %v147
  %v162 = vadd.f32 %v160, 1e-05
  %v163 = vadd.f32 %v161, 1e-05
  %v164 = vrsqrt.pop %v162
  %v165 = vmul.f32 %v164, %v162
  %v166 = vmul.f32 %v165, %v164
  %v167 = vmul.f32 0.5, %v166
  %v168 = vsub.f32 1.5, %v167
  %v169 = vmul.f32 %v164, %v168
  %vm170 = vweird.f32 %v162
  %vm171 = vweird.f32 %v164
  %vm172 = vmor %vm170, %vm171
  %v173 = vsel %vm172, %v164, %v169
  %v174 = vrsqrt.pop %v163
  %v175 = vmul.f32 %v174, %v163
  %v176 = vmul.f32 %v175, %v174
  %v177 = vmul.f32 0.5, %v176
  %v178 = vsub.f32 1.5, %v177
  %v179 = vmul.f32 %v174, %v178
  %vm180 = vweird.f32 %v163
  %vm181 = vweird.f32 %v174
  %vm182 = vmor %vm180, %vm181
  %v183 = vsel %vm182, %v174, %v179
  %v184 = vmul.f32 %v150, %v173
  %v185 = vmul.f32 %v151, %v183
  %v187 = vperm.slane %v133, 0
  %v189 = vmul.f32 %v184, %v187
  %v190 = vmul.f32 %v185, %v187
  %v192 = vperm.slane %v134, 0
  %v194 = vadd.f32 %v189, %v192
  %v195 = vadd.f32 %v190, %v192
  %v196 = vpack.c.bf16 %v194, %v194
  %v197 = vpack.c.bf16 %v195, %v195
  %vm198 = vcmask 257024
  %199 = vst.msk [vmem:[%s7] sm:$0xf] %vm198, %v196
  %200 = vst.msk [vmem:[%s7 + $0x4] sm:$0xf] %vm198, %v197
  // Predicated region
  $region30: #{bayesformer_forward.8} parent=0 // pred_check
    _
  $region31: #{bayesformer_forward.8} parent=0 // pred_check_branch
    %202 = sbr.rel (0) target = $region33
  $region32: #{bayesformer_forward.8} parent=0 // pred_region
    _
  $region33: #{bayesformer_forward.8} parent=0 // pred_fallthru
    _
  // Predicated region
  $region34: #{bayesformer_forward.8} parent=0 // pred_check
    _
  $region35: #{bayesformer_forward.8} parent=0 // pred_check_branch
    %204 = sbr.rel (0) target = $region37
  $region36: #{bayesformer_forward.8} parent=0 // pred_region
    _
  $region37: #{bayesformer_forward.8} parent=0 // pred_fallthru
    _

</llo_original>
